<compile_context>
chip_gen: v5e
topology: v5e:2x2
jax: 0.10.0
libtpu: 0.0.40
codegen_flags: <defaults>
</compile_context>

<pallas_src>
import math
import functools

import jax
import jax.numpy as jnp
from jax import lax
from jax.experimental import pallas as pl
from jax.experimental.pallas import tpu as pltpu

# ---------------- small BERT config ----------------
VOCAB = 100
HIDDEN = 32
NUM_HEADS = 4
HEAD_DIM = HIDDEN // NUM_HEADS
INTER = 64
NUM_LAYERS = 2
MAX_POS = 16
TYPE_VOCAB = 2
PAD_ID = 0
LN_EPS = 1e-12

B, S = 2, 8


def _layernorm(x, gamma, beta, eps):
    mu = jnp.mean(x, axis=-1, keepdims=True)
    var = jnp.mean(jnp.square(x - mu), axis=-1, keepdims=True)
    return (x - mu) * lax.rsqrt(var + eps) * gamma + beta


def _gelu(x):
    # matches HF gelu: x * 0.5 * (1 + erf(x / sqrt(2)))
    return x * 0.5 * (1.0 + lax.erf(x / math.sqrt(2.0)))


# ---------------- fused BERT kernel: embeddings LN + all encoder layers ----------------
def bert_fused_kernel(emb_ref, mask_ref, eg_ref, eb_ref,
                      wqkv_ref, bqkv_ref, wo_ref, wi_ref, wd_ref,
                      vech_ref, bi_ref, out_ref):
    scale = 1.0 / math.sqrt(HEAD_DIM)
    mask = mask_ref[...]                                   # (B, 1, S) additive mask

    # embeddings LayerNorm folded into the same kernel (no extra launch)
    x = _layernorm(emb_ref[...], eg_ref[...], eb_ref[...], LN_EPS)   # (B*S, H)

    for l in range(NUM_LAYERS):                            # static unroll; weights VMEM-resident
        wqkv = wqkv_ref[l]                                 # (H, 3H)
        bqkv = bqkv_ref[l]                                 # (1, 3H)
        wo = wo_ref[l]                                     # (H, H)
        wi = wi_ref[l]                                     # (H, INTER)
        wd = wd_ref[l]                                     # (INTER, H)
        vech = vech_ref[l]                                 # (6, H): bo, g1, b1, bd, g2, b2
        bo, g1, b1 = vech[0:1], vech[1:2], vech[2:3]
        bd, g2, b2 = vech[3:4], vech[4:5], vech[5:6]
        bi = bi_ref[l]                                     # (1, INTER)

        # fused QKV projection over the whole folded batch (M = B*S)
        qkv = jnp.dot(x, wqkv, preferred_element_type=jnp.float32) + bqkv   # (B*S, 3H)
        qkv = qkv.reshape(B, S, 3 * HIDDEN)

        # attention: batched over B via einsum; heads statically unrolled (tiny)
        ctx_heads = []
        for h in range(NUM_HEADS):
            lo = h * HEAD_DIM
            qh = qkv[:, :, lo:lo + HEAD_DIM]                              # (B, S, d)
            kh = qkv[:, :, HIDDEN + lo:HIDDEN + lo + HEAD_DIM]            # (B, S, d)
            vh = qkv[:, :, 2 * HIDDEN + lo:2 * HIDDEN + lo + HEAD_DIM]    # (B, S, d)
            s = jnp.einsum('bqd,bkd->bqk', qh, kh,
                           preferred_element_type=jnp.float32)            # (B, S, S)
            s = s * scale + mask
            s = s - jnp.max(s, axis=-1, keepdims=True)
            p = jnp.exp(s)
            p = p * pl.reciprocal(jnp.sum(p, axis=-1, keepdims=True), approx=True)
            ctx_heads.append(jnp.einsum('bqk,bkd->bqd', p, vh,
                                        preferred_element_type=jnp.float32))
        ctx = jnp.concatenate(ctx_heads, axis=-1).reshape(B * S, HIDDEN)   # stays in vregs

        attn = jnp.dot(ctx, wo, preferred_element_type=jnp.float32) + bo
        h1 = _layernorm(attn + x, g1, b1, LN_EPS)

        inter = _gelu(jnp.dot(h1, wi, preferred_element_type=jnp.float32) + bi)
        ffn = jnp.dot(inter, wd, preferred_element_type=jnp.float32) + bd
        x = _layernorm(ffn + h1, g2, b2, LN_EPS)

    out_ref[...] = x


# ---------------- weight packing (7 stacked arrays instead of 18/layer) ----------------
def pack_params(params):
    layers = params["layers"]
    wqkv = jnp.stack([jnp.concatenate([lp["wq"], lp["wk"], lp["wv"]], axis=1) for lp in layers])
    bqkv = jnp.stack([jnp.concatenate([lp["bq"], lp["bk"], lp["bv"]], axis=1) for lp in layers])
    wo = jnp.stack([lp["wo"] for lp in layers])
    wi = jnp.stack([lp["wi"] for lp in layers])
    wd = jnp.stack([lp["wd"] for lp in layers])
    vech = jnp.stack([jnp.concatenate(
        [lp["bo"], lp["g1"], lp["b1"], lp["bd"], lp["g2"], lp["b2"]], axis=0) for lp in layers])
    bi = jnp.stack([lp["bi"] for lp in layers])
    return wqkv, bqkv, wo, wi, wd, vech, bi


# ---------------- parameters ----------------
def init_bert_params(key):
    keys = iter(jax.random.split(key, 256))

    def dense(shape):
        return jax.random.normal(next(keys), shape, jnp.float32) * 0.02

    word = dense((VOCAB, HIDDEN)).at[PAD_ID].set(0.0)   # padding_idx row zeroed
    params = {
        "word_emb": word,
        "pos_emb": dense((MAX_POS, HIDDEN)),
        "type_emb": dense((TYPE_VOCAB, HIDDEN)),
        "emb_ln_g": jnp.ones((1, HIDDEN), jnp.float32),
        "emb_ln_b": jnp.zeros((1, HIDDEN), jnp.float32),
        "layers": [],
    }
    for _ in range(NUM_LAYERS):
        params["layers"].append(dict(
            wq=dense((HIDDEN, HIDDEN)), bq=dense((1, HIDDEN)),
            wk=dense((HIDDEN, HIDDEN)), bk=dense((1, HIDDEN)),
            wv=dense((HIDDEN, HIDDEN)), bv=dense((1, HIDDEN)),
            wo=dense((HIDDEN, HIDDEN)), bo=dense((1, HIDDEN)),
            g1=jnp.ones((1, HIDDEN), jnp.float32), b1=jnp.zeros((1, HIDDEN), jnp.float32),
            wi=dense((HIDDEN, INTER)), bi=dense((1, INTER)),
            wd=dense((INTER, HIDDEN)), bd=dense((1, HIDDEN)),
            g2=jnp.ones((1, HIDDEN), jnp.float32), b2=jnp.zeros((1, HIDDEN), jnp.float32),
        ))
    return params


# ---------------- full model: embedding gather in XLA glue, everything else fused ----------------
@jax.jit
def bert_forward(params, input_ids, attention_mask):
    b, s = input_ids.shape
    emb = params["word_emb"][input_ids]                                # gather (glue)
    emb = emb + params["type_emb"][0][None, None, :]                   # token_type id 0
    emb = emb + params["pos_emb"][:s][None, :, :]
    emb2d = emb.reshape(b * s, HIDDEN)

    packed = pack_params(params)
    out2d = pl.pallas_call(
        bert_fused_kernel,
        out_shape=jax.ShapeDtypeStruct((b * s, HIDDEN), jnp.float32),
    )(emb2d, attention_mask, params["emb_ln_g"], params["emb_ln_b"], *packed)
    # NOTE: for v7x (2 TCs/chip) a "parallel" batch grid axis could split rows
    # across cores; at B=2, S=8 the fully fused single-step kernel is faster.
    return out2d.reshape(b, s, HIDDEN)


# ---------------- pure-JAX reference for verification ----------------
def ref_forward(params, input_ids, attention_mask):
    b, s = input_ids.shape
    x = params["word_emb"][input_ids]
    x = x + params["type_emb"][0][None, None, :] + params["pos_emb"][:s][None, :, :]
    x = _layernorm(x, params["emb_ln_g"], params["emb_ln_b"], LN_EPS)
    for lp in params["layers"]:
        q = x @ lp["wq"] + lp["bq"]
        k = x @ lp["wk"] + lp["bk"]
        v = x @ lp["wv"] + lp["bv"]

        def split(t):
            return t.reshape(b, s, NUM_HEADS, HEAD_DIM).transpose(0, 2, 1, 3)

        qh, kh, vh = split(q), split(k), split(v)
        scores = jnp.einsum("bhqd,bhkd->bhqk", qh, kh) / math.sqrt(HEAD_DIM)
        scores = scores + attention_mask[:, :, None, :]
        p = jax.nn.softmax(scores, axis=-1)
        ctx = jnp.einsum("bhqk,bhkd->bhqd", p, vh).transpose(0, 2, 1, 3).reshape(b, s, HIDDEN)
        attn = ctx @ lp["wo"] + lp["bo"]
        h1 = _layernorm(attn + x, lp["g1"], lp["b1"], LN_EPS)
        inter = _gelu(h1 @ lp["wi"] + lp["bi"])
        ffn = inter @ lp["wd"] + lp["bd"]
        x = _layernorm(ffn + h1, lp["g2"], lp["b2"], LN_EPS)
    return x


if __name__ == "__main__":
    key = jax.random.PRNGKey(0)
    pkey, ikey = jax.random.split(key)
    params = init_bert_params(pkey)

    input_ids = jax.random.randint(ikey, (B, S), 1, VOCAB)
    input_ids = input_ids.at[1, -2:].set(PAD_ID)              # pad last 2 tokens of row 1
    valid = jnp.ones((B, S), jnp.float32).at[1, -2:].set(0.0)
    attention_mask = ((1.0 - valid) * -10000.0)[:, None, :]   # (B, 1, S) additive mask

    out = bert_forward(params, input_ids, attention_mask)
    out = jax.block_until_ready(out)

    ref = ref_forward(params, input_ids, attention_mask)
    assert out.shape == (B, S, HIDDEN), out.shape
    max_err = float(jnp.max(jnp.abs(out - ref)))
    # 2e-3 tolerance: approx (EUP) reciprocal in softmax + fp32 MXU passes.
    assert jnp.allclose(out, ref, atol=2e-3, rtol=2e-3), max_err
    print("KERNEL_OK")
</pallas_src>

<mosaic_0001>
module attributes {stable_mosaic.version = 11 : i64} {
  func.func @bert_fused_kernel(%arg0: memref<16x32xf32, #tpu.memory_space<vmem>>, %arg1: memref<2x1x8xf32, #tpu.memory_space<vmem>>, %arg2: memref<1x32xf32, #tpu.memory_space<vmem>>, %arg3: memref<1x32xf32, #tpu.memory_space<vmem>>, %arg4: memref<2x32x96xf32, #tpu.memory_space<vmem>>, %arg5: memref<2x1x96xf32, #tpu.memory_space<vmem>>, %arg6: memref<2x32x32xf32, #tpu.memory_space<vmem>>, %arg7: memref<2x32x64xf32, #tpu.memory_space<vmem>>, %arg8: memref<2x64x32xf32, #tpu.memory_space<vmem>>, %arg9: memref<2x6x32xf32, #tpu.memory_space<vmem>>, %arg10: memref<2x1x64xf32, #tpu.memory_space<vmem>>, %arg11: memref<16x32xf32, #tpu.memory_space<vmem>>) attributes {dimension_semantics = [], scalar_prefetch = 0 : i64, scratch_operands = 0 : i64, tpu.core_type = #tpu.core_type<tc>} {
    %c0 = arith.constant 0 : index
    %c0_0 = arith.constant 0 : index
    %c0_1 = arith.constant 0 : index
    %0 = vector.load %arg1[%c0, %c0_0, %c0_1] : memref<2x1x8xf32, #tpu.memory_space<vmem>>, vector<2x1x8xf32>
    %c0_2 = arith.constant 0 : index
    %c0_3 = arith.constant 0 : index
    %1 = vector.load %arg0[%c0_2, %c0_3] : memref<16x32xf32, #tpu.memory_space<vmem>>, vector<16x32xf32>
    %c0_4 = arith.constant 0 : index
    %c0_5 = arith.constant 0 : index
    %2 = vector.load %arg2[%c0_4, %c0_5] : memref<1x32xf32, #tpu.memory_space<vmem>>, vector<1x32xf32>
    %c0_6 = arith.constant 0 : index
    %c0_7 = arith.constant 0 : index
    %3 = vector.load %arg3[%c0_6, %c0_7] : memref<1x32xf32, #tpu.memory_space<vmem>>, vector<1x32xf32>
    %cst = arith.constant dense<0.000000e+00> : vector<16xf32>
    %4 = vector.multi_reduction <add>, %1, %cst [1] : vector<16x32xf32> to vector<16xf32>
    %5 = vector.shape_cast %4 : vector<16xf32> to vector<16x1xf32>
    %cst_8 = arith.constant 3.200000e+01 : f32
    %6 = vector.broadcast %cst_8 : f32 to vector<16x1xf32>
    %7 = arith.divf %5, %6 : vector<16x1xf32>
    %8 = vector.broadcast %7 : vector<16x1xf32> to vector<16x32xf32>
    %9 = arith.subf %1, %8 : vector<16x32xf32>
    %10 = arith.mulf %9, %9 : vector<16x32xf32>
    %cst_9 = arith.constant dense<0.000000e+00> : vector<16xf32>
    %11 = vector.multi_reduction <add>, %10, %cst_9 [1] : vector<16x32xf32> to vector<16xf32>
    %12 = vector.shape_cast %11 : vector<16xf32> to vector<16x1xf32>
    %cst_10 = arith.constant 3.200000e+01 : f32
    %13 = vector.broadcast %cst_10 : f32 to vector<16x1xf32>
    %14 = arith.divf %12, %13 : vector<16x1xf32>
    %15 = vector.broadcast %7 : vector<16x1xf32> to vector<16x32xf32>
    %16 = arith.subf %1, %15 : vector<16x32xf32>
    %cst_11 = arith.constant 9.99999996E-13 : f32
    %17 = vector.broadcast %cst_11 : f32 to vector<16x1xf32>
    %18 = arith.addf %14, %17 : vector<16x1xf32>
    %19 = math.rsqrt %18 : vector<16x1xf32>
    %20 = vector.broadcast %19 : vector<16x1xf32> to vector<16x32xf32>
    %21 = arith.mulf %16, %20 : vector<16x32xf32>
    %22 = vector.broadcast %2 : vector<1x32xf32> to vector<16x32xf32>
    %23 = arith.mulf %21, %22 : vector<16x32xf32>
    %24 = vector.broadcast %3 : vector<1x32xf32> to vector<16x32xf32>
    %25 = arith.addf %23, %24 : vector<16x32xf32>
    %c0_12 = arith.constant 0 : index
    %c0_13 = arith.constant 0 : index
    %c0_14 = arith.constant 0 : index
    %26 = vector.load %arg4[%c0_12, %c0_13, %c0_14] : memref<2x32x96xf32, #tpu.memory_space<vmem>>, vector<1x32x96xf32>
    %27 = vector.shape_cast %26 : vector<1x32x96xf32> to vector<32x96xf32>
    %c0_15 = arith.constant 0 : index
    %c0_16 = arith.constant 0 : index
    %c0_17 = arith.constant 0 : index
    %28 = vector.load %arg5[%c0_15, %c0_16, %c0_17] : memref<2x1x96xf32, #tpu.memory_space<vmem>>, vector<1x1x96xf32>
    %29 = vector.shape_cast %28 : vector<1x1x96xf32> to vector<1x96xf32>
    %c0_18 = arith.constant 0 : index
    %c0_19 = arith.constant 0 : index
    %c0_20 = arith.constant 0 : index
    %30 = vector.load %arg6[%c0_18, %c0_19, %c0_20] : memref<2x32x32xf32, #tpu.memory_space<vmem>>, vector<1x32x32xf32>
    %31 = vector.shape_cast %30 : vector<1x32x32xf32> to vector<32x32xf32>
    %c0_21 = arith.constant 0 : index
    %c0_22 = arith.constant 0 : index
    %c0_23 = arith.constant 0 : index
    %32 = vector.load %arg7[%c0_21, %c0_22, %c0_23] : memref<2x32x64xf32, #tpu.memory_space<vmem>>, vector<1x32x64xf32>
    %33 = vector.shape_cast %32 : vector<1x32x64xf32> to vector<32x64xf32>
    %c0_24 = arith.constant 0 : index
    %c0_25 = arith.constant 0 : index
    %c0_26 = arith.constant 0 : index
    %34 = vector.load %arg8[%c0_24, %c0_25, %c0_26] : memref<2x64x32xf32, #tpu.memory_space<vmem>>, vector<1x64x32xf32>
    %35 = vector.shape_cast %34 : vector<1x64x32xf32> to vector<64x32xf32>
    %c0_27 = arith.constant 0 : index
    %c0_28 = arith.constant 0 : index
    %c0_29 = arith.constant 0 : index
    %36 = vector.load %arg9[%c0_27, %c0_28, %c0_29] : memref<2x6x32xf32, #tpu.memory_space<vmem>>, vector<1x6x32xf32>
    %37 = vector.shape_cast %36 : vector<1x6x32xf32> to vector<6x32xf32>
    %38 = vector.extract_strided_slice %37 {offsets = [0, 0], sizes = [1, 32], strides = [1, 1]} : vector<6x32xf32> to vector<1x32xf32>
    %39 = vector.extract_strided_slice %37 {offsets = [1, 0], sizes = [1, 32], strides = [1, 1]} : vector<6x32xf32> to vector<1x32xf32>
    %40 = vector.extract_strided_slice %37 {offsets = [2, 0], sizes = [1, 32], strides = [1, 1]} : vector<6x32xf32> to vector<1x32xf32>
    %41 = vector.extract_strided_slice %37 {offsets = [3, 0], sizes = [1, 32], strides = [1, 1]} : vector<6x32xf32> to vector<1x32xf32>
    %42 = vector.extract_strided_slice %37 {offsets = [4, 0], sizes = [1, 32], strides = [1, 1]} : vector<6x32xf32> to vector<1x32xf32>
    %43 = vector.extract_strided_slice %37 {offsets = [5, 0], sizes = [1, 32], strides = [1, 1]} : vector<6x32xf32> to vector<1x32xf32>
    %c0_30 = arith.constant 0 : index
    %c0_31 = arith.constant 0 : index
    %c0_32 = arith.constant 0 : index
    %44 = vector.load %arg10[%c0_30, %c0_31, %c0_32] : memref<2x1x64xf32, #tpu.memory_space<vmem>>, vector<1x1x64xf32>
    %45 = vector.shape_cast %44 : vector<1x1x64xf32> to vector<1x64xf32>
    %cst_33 = arith.constant dense<0.000000e+00> : vector<16x96xf32>
    %46 = tpu.matmul %25, %27, %cst_33 {dimension_numbers = #tpu.dot_dimension_numbers<[1], [0], [0], [1], [0, 0, 1, 1], [], []>} : vector<16x32xf32>, vector<32x96xf32>, vector<16x96xf32> -> vector<16x96xf32>
    %47 = vector.broadcast %29 : vector<1x96xf32> to vector<16x96xf32>
    %48 = arith.addf %46, %47 : vector<16x96xf32>
    %49 = vector.shape_cast %48 : vector<16x96xf32> to vector<2x8x96xf32>
    %50 = vector.extract_strided_slice %49 {offsets = [0, 0, 0], sizes = [2, 8, 8], strides = [1, 1, 1]} : vector<2x8x96xf32> to vector<2x8x8xf32>
    %51 = vector.extract_strided_slice %49 {offsets = [0, 0, 32], sizes = [2, 8, 8], strides = [1, 1, 1]} : vector<2x8x96xf32> to vector<2x8x8xf32>
    %52 = vector.extract_strided_slice %49 {offsets = [0, 0, 64], sizes = [2, 8, 8], strides = [1, 1, 1]} : vector<2x8x96xf32> to vector<2x8x8xf32>
    "tpu.trace_start"() <{level = 10 : i32, message = "bqd,bkd->bqk"}> : () -> ()
    %cst_34 = arith.constant dense<0.000000e+00> : vector<2x8x8xf32>
    %53 = tpu.matmul %50, %51, %cst_34 {dimension_numbers = #tpu.dot_dimension_numbers<[2], [2], [1], [1], [0, 0, 0, 1, 1, 1], [0], [0]>} : vector<2x8x8xf32>, vector<2x8x8xf32>, vector<2x8x8xf32> -> vector<2x8x8xf32>
    "tpu.trace_stop"() : () -> ()
    %cst_35 = arith.constant 0.353553385 : f32
    %54 = vector.broadcast %cst_35 : f32 to vector<2x8x8xf32>
    %55 = arith.mulf %53, %54 : vector<2x8x8xf32>
    %56 = vector.broadcast %0 : vector<2x1x8xf32> to vector<2x8x8xf32>
    %57 = arith.addf %55, %56 : vector<2x8x8xf32>
    %cst_36 = arith.constant dense<0xFF800000> : vector<2x8xf32>
    %58 = vector.multi_reduction <maximumf>, %57, %cst_36 [2] : vector<2x8x8xf32> to vector<2x8xf32>
    %59 = vector.shape_cast %58 : vector<2x8xf32> to vector<2x8x1xf32>
    %60 = vector.broadcast %59 : vector<2x8x1xf32> to vector<2x8x8xf32>
    %61 = arith.subf %57, %60 : vector<2x8x8xf32>
    %62 = math.exp %61 : vector<2x8x8xf32>
    %cst_37 = arith.constant dense<0.000000e+00> : vector<2x8xf32>
    %63 = vector.multi_reduction <add>, %62, %cst_37 [2] : vector<2x8x8xf32> to vector<2x8xf32>
    %64 = vector.shape_cast %63 : vector<2x8xf32> to vector<2x8x1xf32>
    %65 = tpu.reciprocal %64 {approx = true} : vector<2x8x1xf32> -> vector<2x8x1xf32>
    %66 = vector.broadcast %65 : vector<2x8x1xf32> to vector<2x8x8xf32>
    %67 = arith.mulf %62, %66 : vector<2x8x8xf32>
    "tpu.trace_start"() <{level = 10 : i32, message = "bqk,bkd->bqd"}> : () -> ()
    %cst_38 = arith.constant dense<0.000000e+00> : vector<2x8x8xf32>
    %68 = tpu.matmul %67, %52, %cst_38 {dimension_numbers = #tpu.dot_dimension_numbers<[2], [1], [1], [2], [0, 0, 0, 1, 1, 2], [0], [0]>} : vector<2x8x8xf32>, vector<2x8x8xf32>, vector<2x8x8xf32> -> vector<2x8x8xf32>
    "tpu.trace_stop"() : () -> ()
    %69 = vector.extract_strided_slice %49 {offsets = [0, 0, 8], sizes = [2, 8, 8], strides = [1, 1, 1]} : vector<2x8x96xf32> to vector<2x8x8xf32>
    %70 = vector.extract_strided_slice %49 {offsets = [0, 0, 40], sizes = [2, 8, 8], strides = [1, 1, 1]} : vector<2x8x96xf32> to vector<2x8x8xf32>
    %71 = vector.extract_strided_slice %49 {offsets = [0, 0, 72], sizes = [2, 8, 8], strides = [1, 1, 1]} : vector<2x8x96xf32> to vector<2x8x8xf32>
    "tpu.trace_start"() <{level = 10 : i32, message = "bqd,bkd->bqk"}> : () -> ()
    %cst_39 = arith.constant dense<0.000000e+00> : vector<2x8x8xf32>
    %72 = tpu.matmul %69, %70, %cst_39 {dimension_numbers = #tpu.dot_dimension_numbers<[2], [2], [1], [1], [0, 0, 0, 1, 1, 1], [0], [0]>} : vector<2x8x8xf32>, vector<2x8x8xf32>, vector<2x8x8xf32> -> vector<2x8x8xf32>
    "tpu.trace_stop"() : () -> ()
    %cst_40 = arith.constant 0.353553385 : f32
    %73 = vector.broadcast %cst_40 : f32 to vector<2x8x8xf32>
    %74 = arith.mulf %72, %73 : vector<2x8x8xf32>
    %75 = vector.broadcast %0 : vector<2x1x8xf32> to vector<2x8x8xf32>
    %76 = arith.addf %74, %75 : vector<2x8x8xf32>
    %cst_41 = arith.constant dense<0xFF800000> : vector<2x8xf32>
    %77 = vector.multi_reduction <maximumf>, %76, %cst_41 [2] : vector<2x8x8xf32> to vector<2x8xf32>
    %78 = vector.shape_cast %77 : vector<2x8xf32> to vector<2x8x1xf32>
    %79 = vector.broadcast %78 : vector<2x8x1xf32> to vector<2x8x8xf32>
    %80 = arith.subf %76, %79 : vector<2x8x8xf32>
    %81 = math.exp %80 : vector<2x8x8xf32>
    %cst_42 = arith.constant dense<0.000000e+00> : vector<2x8xf32>
    %82 = vector.multi_reduction <add>, %81, %cst_42 [2] : vector<2x8x8xf32> to vector<2x8xf32>
    %83 = vector.shape_cast %82 : vector<2x8xf32> to vector<2x8x1xf32>
    %84 = tpu.reciprocal %83 {approx = true} : vector<2x8x1xf32> -> vector<2x8x1xf32>
    %85 = vector.broadcast %84 : vector<2x8x1xf32> to vector<2x8x8xf32>
    %86 = arith.mulf %81, %85 : vector<2x8x8xf32>
    "tpu.trace_start"() <{level = 10 : i32, message = "bqk,bkd->bqd"}> : () -> ()
    %cst_43 = arith.constant dense<0.000000e+00> : vector<2x8x8xf32>
    %87 = tpu.matmul %86, %71, %cst_43 {dimension_numbers = #tpu.dot_dimension_numbers<[2], [1], [1], [2], [0, 0, 0, 1, 1, 2], [0], [0]>} : vector<2x8x8xf32>, vector<2x8x8xf32>, vector<2x8x8xf32> -> vector<2x8x8xf32>
    "tpu.trace_stop"() : () -> ()
    %88 = vector.extract_strided_slice %49 {offsets = [0, 0, 16], sizes = [2, 8, 8], strides = [1, 1, 1]} : vector<2x8x96xf32> to vector<2x8x8xf32>
    %89 = vector.extract_strided_slice %49 {offsets = [0, 0, 48], sizes = [2, 8, 8], strides = [1, 1, 1]} : vector<2x8x96xf32> to vector<2x8x8xf32>
    %90 = vector.extract_strided_slice %49 {offsets = [0, 0, 80], sizes = [2, 8, 8], strides = [1, 1, 1]} : vector<2x8x96xf32> to vector<2x8x8xf32>
    "tpu.trace_start"() <{level = 10 : i32, message = "bqd,bkd->bqk"}> : () -> ()
    %cst_44 = arith.constant dense<0.000000e+00> : vector<2x8x8xf32>
    %91 = tpu.matmul %88, %89, %cst_44 {dimension_numbers = #tpu.dot_dimension_numbers<[2], [2], [1], [1], [0, 0, 0, 1, 1, 1], [0], [0]>} : vector<2x8x8xf32>, vector<2x8x8xf32>, vector<2x8x8xf32> -> vector<2x8x8xf32>
    "tpu.trace_stop"() : () -> ()
    %cst_45 = arith.constant 0.353553385 : f32
    %92 = vector.broadcast %cst_45 : f32 to vector<2x8x8xf32>
    %93 = arith.mulf %91, %92 : vector<2x8x8xf32>
    %94 = vector.broadcast %0 : vector<2x1x8xf32> to vector<2x8x8xf32>
    %95 = arith.addf %93, %94 : vector<2x8x8xf32>
    %cst_46 = arith.constant dense<0xFF800000> : vector<2x8xf32>
    %96 = vector.multi_reduction <maximumf>, %95, %cst_46 [2] : vector<2x8x8xf32> to vector<2x8xf32>
    %97 = vector.shape_cast %96 : vector<2x8xf32> to vector<2x8x1xf32>
    %98 = vector.broadcast %97 : vector<2x8x1xf32> to vector<2x8x8xf32>
    %99 = arith.subf %95, %98 : vector<2x8x8xf32>
    %100 = math.exp %99 : vector<2x8x8xf32>
    %cst_47 = arith.constant dense<0.000000e+00> : vector<2x8xf32>
    %101 = vector.multi_reduction <add>, %100, %cst_47 [2] : vector<2x8x8xf32> to vector<2x8xf32>
    %102 = vector.shape_cast %101 : vector<2x8xf32> to vector<2x8x1xf32>
    %103 = tpu.reciprocal %102 {approx = true} : vector<2x8x1xf32> -> vector<2x8x1xf32>
    %104 = vector.broadcast %103 : vector<2x8x1xf32> to vector<2x8x8xf32>
    %105 = arith.mulf %100, %104 : vector<2x8x8xf32>
    "tpu.trace_start"() <{level = 10 : i32, message = "bqk,bkd->bqd"}> : () -> ()
    %cst_48 = arith.constant dense<0.000000e+00> : vector<2x8x8xf32>
    %106 = tpu.matmul %105, %90, %cst_48 {dimension_numbers = #tpu.dot_dimension_numbers<[2], [1], [1], [2], [0, 0, 0, 1, 1, 2], [0], [0]>} : vector<2x8x8xf32>, vector<2x8x8xf32>, vector<2x8x8xf32> -> vector<2x8x8xf32>
    "tpu.trace_stop"() : () -> ()
    %107 = vector.extract_strided_slice %49 {offsets = [0, 0, 24], sizes = [2, 8, 8], strides = [1, 1, 1]} : vector<2x8x96xf32> to vector<2x8x8xf32>
    %108 = vector.extract_strided_slice %49 {offsets = [0, 0, 56], sizes = [2, 8, 8], strides = [1, 1, 1]} : vector<2x8x96xf32> to vector<2x8x8xf32>
    %109 = vector.extract_strided_slice %49 {offsets = [0, 0, 88], sizes = [2, 8, 8], strides = [1, 1, 1]} : vector<2x8x96xf32> to vector<2x8x8xf32>
    "tpu.trace_start"() <{level = 10 : i32, message = "bqd,bkd->bqk"}> : () -> ()
    %cst_49 = arith.constant dense<0.000000e+00> : vector<2x8x8xf32>
    %110 = tpu.matmul %107, %108, %cst_49 {dimension_numbers = #tpu.dot_dimension_numbers<[2], [2], [1], [1], [0, 0, 0, 1, 1, 1], [0], [0]>} : vector<2x8x8xf32>, vector<2x8x8xf32>, vector<2x8x8xf32> -> vector<2x8x8xf32>
    "tpu.trace_stop"() : () -> ()
    %cst_50 = arith.constant 0.353553385 : f32
    %111 = vector.broadcast %cst_50 : f32 to vector<2x8x8xf32>
    %112 = arith.mulf %110, %111 : vector<2x8x8xf32>
    %113 = vector.broadcast %0 : vector<2x1x8xf32> to vector<2x8x8xf32>
    %114 = arith.addf %112, %113 : vector<2x8x8xf32>
    %cst_51 = arith.constant dense<0xFF800000> : vector<2x8xf32>
    %115 = vector.multi_reduction <maximumf>, %114, %cst_51 [2] : vector<2x8x8xf32> to vector<2x8xf32>
    %116 = vector.shape_cast %115 : vector<2x8xf32> to vector<2x8x1xf32>
    %117 = vector.broadcast %116 : vector<2x8x1xf32> to vector<2x8x8xf32>
    %118 = arith.subf %114, %117 : vector<2x8x8xf32>
    %119 = math.exp %118 : vector<2x8x8xf32>
    %cst_52 = arith.constant dense<0.000000e+00> : vector<2x8xf32>
    %120 = vector.multi_reduction <add>, %119, %cst_52 [2] : vector<2x8x8xf32> to vector<2x8xf32>
    %121 = vector.shape_cast %120 : vector<2x8xf32> to vector<2x8x1xf32>
    %122 = tpu.reciprocal %121 {approx = true} : vector<2x8x1xf32> -> vector<2x8x1xf32>
    %123 = vector.broadcast %122 : vector<2x8x1xf32> to vector<2x8x8xf32>
    %124 = arith.mulf %119, %123 : vector<2x8x8xf32>
    "tpu.trace_start"() <{level = 10 : i32, message = "bqk,bkd->bqd"}> : () -> ()
    %cst_53 = arith.constant dense<0.000000e+00> : vector<2x8x8xf32>
    %125 = tpu.matmul %124, %109, %cst_53 {dimension_numbers = #tpu.dot_dimension_numbers<[2], [1], [1], [2], [0, 0, 0, 1, 1, 2], [0], [0]>} : vector<2x8x8xf32>, vector<2x8x8xf32>, vector<2x8x8xf32> -> vector<2x8x8xf32>
    "tpu.trace_stop"() : () -> ()
    %126 = tpu.concatenate %68, %87, %106, %125 in 2 : vector<2x8x8xf32>, vector<2x8x8xf32>, vector<2x8x8xf32>, vector<2x8x8xf32> -> vector<2x8x32xf32>
    %127 = vector.shape_cast %126 : vector<2x8x32xf32> to vector<16x32xf32>
    %cst_54 = arith.constant dense<0.000000e+00> : vector<16x32xf32>
    %128 = tpu.matmul %127, %31, %cst_54 {dimension_numbers = #tpu.dot_dimension_numbers<[1], [0], [0], [1], [0, 0, 1, 1], [], []>} : vector<16x32xf32>, vector<32x32xf32>, vector<16x32xf32> -> vector<16x32xf32>
    %129 = vector.broadcast %38 : vector<1x32xf32> to vector<16x32xf32>
    %130 = arith.addf %128, %129 : vector<16x32xf32>
    %131 = arith.addf %130, %25 : vector<16x32xf32>
    %cst_55 = arith.constant dense<0.000000e+00> : vector<16xf32>
    %132 = vector.multi_reduction <add>, %131, %cst_55 [1] : vector<16x32xf32> to vector<16xf32>
    %133 = vector.shape_cast %132 : vector<16xf32> to vector<16x1xf32>
    %cst_56 = arith.constant 3.200000e+01 : f32
    %134 = vector.broadcast %cst_56 : f32 to vector<16x1xf32>
    %135 = arith.divf %133, %134 : vector<16x1xf32>
    %136 = vector.broadcast %135 : vector<16x1xf32> to vector<16x32xf32>
    %137 = arith.subf %131, %136 : vector<16x32xf32>
    %138 = arith.mulf %137, %137 : vector<16x32xf32>
    %cst_57 = arith.constant dense<0.000000e+00> : vector<16xf32>
    %139 = vector.multi_reduction <add>, %138, %cst_57 [1] : vector<16x32xf32> to vector<16xf32>
    %140 = vector.shape_cast %139 : vector<16xf32> to vector<16x1xf32>
    %cst_58 = arith.constant 3.200000e+01 : f32
    %141 = vector.broadcast %cst_58 : f32 to vector<16x1xf32>
    %142 = arith.divf %140, %141 : vector<16x1xf32>
    %143 = vector.broadcast %135 : vector<16x1xf32> to vector<16x32xf32>
    %144 = arith.subf %131, %143 : vector<16x32xf32>
    %cst_59 = arith.constant 9.99999996E-13 : f32
    %145 = vector.broadcast %cst_59 : f32 to vector<16x1xf32>
    %146 = arith.addf %142, %145 : vector<16x1xf32>
    %147 = math.rsqrt %146 : vector<16x1xf32>
    %148 = vector.broadcast %147 : vector<16x1xf32> to vector<16x32xf32>
    %149 = arith.mulf %144, %148 : vector<16x32xf32>
    %150 = vector.broadcast %39 : vector<1x32xf32> to vector<16x32xf32>
    %151 = arith.mulf %149, %150 : vector<16x32xf32>
    %152 = vector.broadcast %40 : vector<1x32xf32> to vector<16x32xf32>
    %153 = arith.addf %151, %152 : vector<16x32xf32>
    %cst_60 = arith.constant dense<0.000000e+00> : vector<16x64xf32>
    %154 = tpu.matmul %153, %33, %cst_60 {dimension_numbers = #tpu.dot_dimension_numbers<[1], [0], [0], [1], [0, 0, 1, 1], [], []>} : vector<16x32xf32>, vector<32x64xf32>, vector<16x64xf32> -> vector<16x64xf32>
    %155 = vector.broadcast %45 : vector<1x64xf32> to vector<16x64xf32>
    %156 = arith.addf %154, %155 : vector<16x64xf32>
    %cst_61 = arith.constant 5.000000e-01 : f32
    %157 = vector.broadcast %cst_61 : f32 to vector<16x64xf32>
    %158 = arith.mulf %156, %157 : vector<16x64xf32>
    %cst_62 = arith.constant 1.41421354 : f32
    %159 = vector.broadcast %cst_62 : f32 to vector<16x64xf32>
    %160 = arith.divf %156, %159 : vector<16x64xf32>
    %161 = math.erf %160 : vector<16x64xf32>
    %cst_63 = arith.constant 1.000000e+00 : f32
    %162 = vector.broadcast %cst_63 : f32 to vector<16x64xf32>
    %163 = arith.addf %162, %161 : vector<16x64xf32>
    %164 = arith.mulf %158, %163 : vector<16x64xf32>
    %cst_64 = arith.constant dense<0.000000e+00> : vector<16x32xf32>
    %165 = tpu.matmul %164, %35, %cst_64 {dimension_numbers = #tpu.dot_dimension_numbers<[1], [0], [0], [1], [0, 0, 1, 1], [], []>} : vector<16x64xf32>, vector<64x32xf32>, vector<16x32xf32> -> vector<16x32xf32>
    %166 = vector.broadcast %41 : vector<1x32xf32> to vector<16x32xf32>
    %167 = arith.addf %165, %166 : vector<16x32xf32>
    %168 = arith.addf %167, %153 : vector<16x32xf32>
    %cst_65 = arith.constant dense<0.000000e+00> : vector<16xf32>
    %169 = vector.multi_reduction <add>, %168, %cst_65 [1] : vector<16x32xf32> to vector<16xf32>
    %170 = vector.shape_cast %169 : vector<16xf32> to vector<16x1xf32>
    %cst_66 = arith.constant 3.200000e+01 : f32
    %171 = vector.broadcast %cst_66 : f32 to vector<16x1xf32>
    %172 = arith.divf %170, %171 : vector<16x1xf32>
    %173 = vector.broadcast %172 : vector<16x1xf32> to vector<16x32xf32>
    %174 = arith.subf %168, %173 : vector<16x32xf32>
    %175 = arith.mulf %174, %174 : vector<16x32xf32>
    %cst_67 = arith.constant dense<0.000000e+00> : vector<16xf32>
    %176 = vector.multi_reduction <add>, %175, %cst_67 [1] : vector<16x32xf32> to vector<16xf32>
    %177 = vector.shape_cast %176 : vector<16xf32> to vector<16x1xf32>
    %cst_68 = arith.constant 3.200000e+01 : f32
    %178 = vector.broadcast %cst_68 : f32 to vector<16x1xf32>
    %179 = arith.divf %177, %178 : vector<16x1xf32>
    %180 = vector.broadcast %172 : vector<16x1xf32> to vector<16x32xf32>
    %181 = arith.subf %168, %180 : vector<16x32xf32>
    %cst_69 = arith.constant 9.99999996E-13 : f32
    %182 = vector.broadcast %cst_69 : f32 to vector<16x1xf32>
    %183 = arith.addf %179, %182 : vector<16x1xf32>
    %184 = math.rsqrt %183 : vector<16x1xf32>
    %185 = vector.broadcast %184 : vector<16x1xf32> to vector<16x32xf32>
    %186 = arith.mulf %181, %185 : vector<16x32xf32>
    %187 = vector.broadcast %42 : vector<1x32xf32> to vector<16x32xf32>
    %188 = arith.mulf %186, %187 : vector<16x32xf32>
    %189 = vector.broadcast %43 : vector<1x32xf32> to vector<16x32xf32>
    %190 = arith.addf %188, %189 : vector<16x32xf32>
    %c1 = arith.constant 1 : index
    %c0_70 = arith.constant 0 : index
    %c0_71 = arith.constant 0 : index
    %191 = vector.load %arg4[%c1, %c0_70, %c0_71] : memref<2x32x96xf32, #tpu.memory_space<vmem>>, vector<1x32x96xf32>
    %192 = vector.shape_cast %191 : vector<1x32x96xf32> to vector<32x96xf32>
    %c1_72 = arith.constant 1 : index
    %c0_73 = arith.constant 0 : index
    %c0_74 = arith.constant 0 : index
    %193 = vector.load %arg5[%c1_72, %c0_73, %c0_74] : memref<2x1x96xf32, #tpu.memory_space<vmem>>, vector<1x1x96xf32>
    %194 = vector.shape_cast %193 : vector<1x1x96xf32> to vector<1x96xf32>
    %c1_75 = arith.constant 1 : index
    %c0_76 = arith.constant 0 : index
    %c0_77 = arith.constant 0 : index
    %195 = vector.load %arg6[%c1_75, %c0_76, %c0_77] : memref<2x32x32xf32, #tpu.memory_space<vmem>>, vector<1x32x32xf32>
    %196 = vector.shape_cast %195 : vector<1x32x32xf32> to vector<32x32xf32>
    %c1_78 = arith.constant 1 : index
    %c0_79 = arith.constant 0 : index
    %c0_80 = arith.constant 0 : index
    %197 = vector.load %arg7[%c1_78, %c0_79, %c0_80] : memref<2x32x64xf32, #tpu.memory_space<vmem>>, vector<1x32x64xf32>
    %198 = vector.shape_cast %197 : vector<1x32x64xf32> to vector<32x64xf32>
    %c1_81 = arith.constant 1 : index
    %c0_82 = arith.constant 0 : index
    %c0_83 = arith.constant 0 : index
    %199 = vector.load %arg8[%c1_81, %c0_82, %c0_83] : memref<2x64x32xf32, #tpu.memory_space<vmem>>, vector<1x64x32xf32>
    %200 = vector.shape_cast %199 : vector<1x64x32xf32> to vector<64x32xf32>
    %c1_84 = arith.constant 1 : index
    %c0_85 = arith.constant 0 : index
    %c0_86 = arith.constant 0 : index
    %201 = vector.load %arg9[%c1_84, %c0_85, %c0_86] : memref<2x6x32xf32, #tpu.memory_space<vmem>>, vector<1x6x32xf32>
    %202 = vector.shape_cast %201 : vector<1x6x32xf32> to vector<6x32xf32>
    %203 = vector.extract_strided_slice %202 {offsets = [0, 0], sizes = [1, 32], strides = [1, 1]} : vector<6x32xf32> to vector<1x32xf32>
    %204 = vector.extract_strided_slice %202 {offsets = [1, 0], sizes = [1, 32], strides = [1, 1]} : vector<6x32xf32> to vector<1x32xf32>
    %205 = vector.extract_strided_slice %202 {offsets = [2, 0], sizes = [1, 32], strides = [1, 1]} : vector<6x32xf32> to vector<1x32xf32>
    %206 = vector.extract_strided_slice %202 {offsets = [3, 0], sizes = [1, 32], strides = [1, 1]} : vector<6x32xf32> to vector<1x32xf32>
    %207 = vector.extract_strided_slice %202 {offsets = [4, 0], sizes = [1, 32], strides = [1, 1]} : vector<6x32xf32> to vector<1x32xf32>
    %208 = vector.extract_strided_slice %202 {offsets = [5, 0], sizes = [1, 32], strides = [1, 1]} : vector<6x32xf32> to vector<1x32xf32>
    %c1_87 = arith.constant 1 : index
    %c0_88 = arith.constant 0 : index
    %c0_89 = arith.constant 0 : index
    %209 = vector.load %arg10[%c1_87, %c0_88, %c0_89] : memref<2x1x64xf32, #tpu.memory_space<vmem>>, vector<1x1x64xf32>
    %210 = vector.shape_cast %209 : vector<1x1x64xf32> to vector<1x64xf32>
    %cst_90 = arith.constant dense<0.000000e+00> : vector<16x96xf32>
    %211 = tpu.matmul %190, %192, %cst_90 {dimension_numbers = #tpu.dot_dimension_numbers<[1], [0], [0], [1], [0, 0, 1, 1], [], []>} : vector<16x32xf32>, vector<32x96xf32>, vector<16x96xf32> -> vector<16x96xf32>
    %212 = vector.broadcast %194 : vector<1x96xf32> to vector<16x96xf32>
    %213 = arith.addf %211, %212 : vector<16x96xf32>
    %214 = vector.shape_cast %213 : vector<16x96xf32> to vector<2x8x96xf32>
    %215 = vector.extract_strided_slice %214 {offsets = [0, 0, 0], sizes = [2, 8, 8], strides = [1, 1, 1]} : vector<2x8x96xf32> to vector<2x8x8xf32>
    %216 = vector.extract_strided_slice %214 {offsets = [0, 0, 32], sizes = [2, 8, 8], strides = [1, 1, 1]} : vector<2x8x96xf32> to vector<2x8x8xf32>
    %217 = vector.extract_strided_slice %214 {offsets = [0, 0, 64], sizes = [2, 8, 8], strides = [1, 1, 1]} : vector<2x8x96xf32> to vector<2x8x8xf32>
    "tpu.trace_start"() <{level = 10 : i32, message = "bqd,bkd->bqk"}> : () -> ()
    %cst_91 = arith.constant dense<0.000000e+00> : vector<2x8x8xf32>
    %218 = tpu.matmul %215, %216, %cst_91 {dimension_numbers = #tpu.dot_dimension_numbers<[2], [2], [1], [1], [0, 0, 0, 1, 1, 1], [0], [0]>} : vector<2x8x8xf32>, vector<2x8x8xf32>, vector<2x8x8xf32> -> vector<2x8x8xf32>
    "tpu.trace_stop"() : () -> ()
    %cst_92 = arith.constant 0.353553385 : f32
    %219 = vector.broadcast %cst_92 : f32 to vector<2x8x8xf32>
    %220 = arith.mulf %218, %219 : vector<2x8x8xf32>
    %221 = vector.broadcast %0 : vector<2x1x8xf32> to vector<2x8x8xf32>
    %222 = arith.addf %220, %221 : vector<2x8x8xf32>
    %cst_93 = arith.constant dense<0xFF800000> : vector<2x8xf32>
    %223 = vector.multi_reduction <maximumf>, %222, %cst_93 [2] : vector<2x8x8xf32> to vector<2x8xf32>
    %224 = vector.shape_cast %223 : vector<2x8xf32> to vector<2x8x1xf32>
    %225 = vector.broadcast %224 : vector<2x8x1xf32> to vector<2x8x8xf32>
    %226 = arith.subf %222, %225 : vector<2x8x8xf32>
    %227 = math.exp %226 : vector<2x8x8xf32>
    %cst_94 = arith.constant dense<0.000000e+00> : vector<2x8xf32>
    %228 = vector.multi_reduction <add>, %227, %cst_94 [2] : vector<2x8x8xf32> to vector<2x8xf32>
    %229 = vector.shape_cast %228 : vector<2x8xf32> to vector<2x8x1xf32>
    %230 = tpu.reciprocal %229 {approx = true} : vector<2x8x1xf32> -> vector<2x8x1xf32>
    %231 = vector.broadcast %230 : vector<2x8x1xf32> to vector<2x8x8xf32>
    %232 = arith.mulf %227, %231 : vector<2x8x8xf32>
    "tpu.trace_start"() <{level = 10 : i32, message = "bqk,bkd->bqd"}> : () -> ()
    %cst_95 = arith.constant dense<0.000000e+00> : vector<2x8x8xf32>
    %233 = tpu.matmul %232, %217, %cst_95 {dimension_numbers = #tpu.dot_dimension_numbers<[2], [1], [1], [2], [0, 0, 0, 1, 1, 2], [0], [0]>} : vector<2x8x8xf32>, vector<2x8x8xf32>, vector<2x8x8xf32> -> vector<2x8x8xf32>
    "tpu.trace_stop"() : () -> ()
    %234 = vector.extract_strided_slice %214 {offsets = [0, 0, 8], sizes = [2, 8, 8], strides = [1, 1, 1]} : vector<2x8x96xf32> to vector<2x8x8xf32>
    %235 = vector.extract_strided_slice %214 {offsets = [0, 0, 40], sizes = [2, 8, 8], strides = [1, 1, 1]} : vector<2x8x96xf32> to vector<2x8x8xf32>
    %236 = vector.extract_strided_slice %214 {offsets = [0, 0, 72], sizes = [2, 8, 8], strides = [1, 1, 1]} : vector<2x8x96xf32> to vector<2x8x8xf32>
    "tpu.trace_start"() <{level = 10 : i32, message = "bqd,bkd->bqk"}> : () -> ()
    %cst_96 = arith.constant dense<0.000000e+00> : vector<2x8x8xf32>
    %237 = tpu.matmul %234, %235, %cst_96 {dimension_numbers = #tpu.dot_dimension_numbers<[2], [2], [1], [1], [0, 0, 0, 1, 1, 1], [0], [0]>} : vector<2x8x8xf32>, vector<2x8x8xf32>, vector<2x8x8xf32> -> vector<2x8x8xf32>
    "tpu.trace_stop"() : () -> ()
    %cst_97 = arith.constant 0.353553385 : f32
    %238 = vector.broadcast %cst_97 : f32 to vector<2x8x8xf32>
    %239 = arith.mulf %237, %238 : vector<2x8x8xf32>
    %240 = vector.broadcast %0 : vector<2x1x8xf32> to vector<2x8x8xf32>
    %241 = arith.addf %239, %240 : vector<2x8x8xf32>
    %cst_98 = arith.constant dense<0xFF800000> : vector<2x8xf32>
    %242 = vector.multi_reduction <maximumf>, %241, %cst_98 [2] : vector<2x8x8xf32> to vector<2x8xf32>
    %243 = vector.shape_cast %242 : vector<2x8xf32> to vector<2x8x1xf32>
    %244 = vector.broadcast %243 : vector<2x8x1xf32> to vector<2x8x8xf32>
    %245 = arith.subf %241, %244 : vector<2x8x8xf32>
    %246 = math.exp %245 : vector<2x8x8xf32>
    %cst_99 = arith.constant dense<0.000000e+00> : vector<2x8xf32>
    %247 = vector.multi_reduction <add>, %246, %cst_99 [2] : vector<2x8x8xf32> to vector<2x8xf32>
    %248 = vector.shape_cast %247 : vector<2x8xf32> to vector<2x8x1xf32>
    %249 = tpu.reciprocal %248 {approx = true} : vector<2x8x1xf32> -> vector<2x8x1xf32>
    %250 = vector.broadcast %249 : vector<2x8x1xf32> to vector<2x8x8xf32>
    %251 = arith.mulf %246, %250 : vector<2x8x8xf32>
    "tpu.trace_start"() <{level = 10 : i32, message = "bqk,bkd->bqd"}> : () -> ()
    %cst_100 = arith.constant dense<0.000000e+00> : vector<2x8x8xf32>
    %252 = tpu.matmul %251, %236, %cst_100 {dimension_numbers = #tpu.dot_dimension_numbers<[2], [1], [1], [2], [0, 0, 0, 1, 1, 2], [0], [0]>} : vector<2x8x8xf32>, vector<2x8x8xf32>, vector<2x8x8xf32> -> vector<2x8x8xf32>
    "tpu.trace_stop"() : () -> ()
    %253 = vector.extract_strided_slice %214 {offsets = [0, 0, 16], sizes = [2, 8, 8], strides = [1, 1, 1]} : vector<2x8x96xf32> to vector<2x8x8xf32>
    %254 = vector.extract_strided_slice %214 {offsets = [0, 0, 48], sizes = [2, 8, 8], strides = [1, 1, 1]} : vector<2x8x96xf32> to vector<2x8x8xf32>
    %255 = vector.extract_strided_slice %214 {offsets = [0, 0, 80], sizes = [2, 8, 8], strides = [1, 1, 1]} : vector<2x8x96xf32> to vector<2x8x8xf32>
    "tpu.trace_start"() <{level = 10 : i32, message = "bqd,bkd->bqk"}> : () -> ()
    %cst_101 = arith.constant dense<0.000000e+00> : vector<2x8x8xf32>
    %256 = tpu.matmul %253, %254, %cst_101 {dimension_numbers = #tpu.dot_dimension_numbers<[2], [2], [1], [1], [0, 0, 0, 1, 1, 1], [0], [0]>} : vector<2x8x8xf32>, vector<2x8x8xf32>, vector<2x8x8xf32> -> vector<2x8x8xf32>
    "tpu.trace_stop"() : () -> ()
    %cst_102 = arith.constant 0.353553385 : f32
    %257 = vector.broadcast %cst_102 : f32 to vector<2x8x8xf32>
    %258 = arith.mulf %256, %257 : vector<2x8x8xf32>
    %259 = vector.broadcast %0 : vector<2x1x8xf32> to vector<2x8x8xf32>
    %260 = arith.addf %258, %259 : vector<2x8x8xf32>
    %cst_103 = arith.constant dense<0xFF800000> : vector<2x8xf32>
    %261 = vector.multi_reduction <maximumf>, %260, %cst_103 [2] : vector<2x8x8xf32> to vector<2x8xf32>
    %262 = vector.shape_cast %261 : vector<2x8xf32> to vector<2x8x1xf32>
    %263 = vector.broadcast %262 : vector<2x8x1xf32> to vector<2x8x8xf32>
    %264 = arith.subf %260, %263 : vector<2x8x8xf32>
    %265 = math.exp %264 : vector<2x8x8xf32>
    %cst_104 = arith.constant dense<0.000000e+00> : vector<2x8xf32>
    %266 = vector.multi_reduction <add>, %265, %cst_104 [2] : vector<2x8x8xf32> to vector<2x8xf32>
    %267 = vector.shape_cast %266 : vector<2x8xf32> to vector<2x8x1xf32>
    %268 = tpu.reciprocal %267 {approx = true} : vector<2x8x1xf32> -> vector<2x8x1xf32>
    %269 = vector.broadcast %268 : vector<2x8x1xf32> to vector<2x8x8xf32>
    %270 = arith.mulf %265, %269 : vector<2x8x8xf32>
    "tpu.trace_start"() <{level = 10 : i32, message = "bqk,bkd->bqd"}> : () -> ()
    %cst_105 = arith.constant dense<0.000000e+00> : vector<2x8x8xf32>
    %271 = tpu.matmul %270, %255, %cst_105 {dimension_numbers = #tpu.dot_dimension_numbers<[2], [1], [1], [2], [0, 0, 0, 1, 1, 2], [0], [0]>} : vector<2x8x8xf32>, vector<2x8x8xf32>, vector<2x8x8xf32> -> vector<2x8x8xf32>
    "tpu.trace_stop"() : () -> ()
    %272 = vector.extract_strided_slice %214 {offsets = [0, 0, 24], sizes = [2, 8, 8], strides = [1, 1, 1]} : vector<2x8x96xf32> to vector<2x8x8xf32>
    %273 = vector.extract_strided_slice %214 {offsets = [0, 0, 56], sizes = [2, 8, 8], strides = [1, 1, 1]} : vector<2x8x96xf32> to vector<2x8x8xf32>
    %274 = vector.extract_strided_slice %214 {offsets = [0, 0, 88], sizes = [2, 8, 8], strides = [1, 1, 1]} : vector<2x8x96xf32> to vector<2x8x8xf32>
    "tpu.trace_start"() <{level = 10 : i32, message = "bqd,bkd->bqk"}> : () -> ()
    %cst_106 = arith.constant dense<0.000000e+00> : vector<2x8x8xf32>
    %275 = tpu.matmul %272, %273, %cst_106 {dimension_numbers = #tpu.dot_dimension_numbers<[2], [2], [1], [1], [0, 0, 0, 1, 1, 1], [0], [0]>} : vector<2x8x8xf32>, vector<2x8x8xf32>, vector<2x8x8xf32> -> vector<2x8x8xf32>
    "tpu.trace_stop"() : () -> ()
    %cst_107 = arith.constant 0.353553385 : f32
    %276 = vector.broadcast %cst_107 : f32 to vector<2x8x8xf32>
    %277 = arith.mulf %275, %276 : vector<2x8x8xf32>
    %278 = vector.broadcast %0 : vector<2x1x8xf32> to vector<2x8x8xf32>
    %279 = arith.addf %277, %278 : vector<2x8x8xf32>
    %cst_108 = arith.constant dense<0xFF800000> : vector<2x8xf32>
    %280 = vector.multi_reduction <maximumf>, %279, %cst_108 [2] : vector<2x8x8xf32> to vector<2x8xf32>
    %281 = vector.shape_cast %280 : vector<2x8xf32> to vector<2x8x1xf32>
    %282 = vector.broadcast %281 : vector<2x8x1xf32> to vector<2x8x8xf32>
    %283 = arith.subf %279, %282 : vector<2x8x8xf32>
    %284 = math.exp %283 : vector<2x8x8xf32>
    %cst_109 = arith.constant dense<0.000000e+00> : vector<2x8xf32>
    %285 = vector.multi_reduction <add>, %284, %cst_109 [2] : vector<2x8x8xf32> to vector<2x8xf32>
    %286 = vector.shape_cast %285 : vector<2x8xf32> to vector<2x8x1xf32>
    %287 = tpu.reciprocal %286 {approx = true} : vector<2x8x1xf32> -> vector<2x8x1xf32>
    %288 = vector.broadcast %287 : vector<2x8x1xf32> to vector<2x8x8xf32>
    %289 = arith.mulf %284, %288 : vector<2x8x8xf32>
    "tpu.trace_start"() <{level = 10 : i32, message = "bqk,bkd->bqd"}> : () -> ()
    %cst_110 = arith.constant dense<0.000000e+00> : vector<2x8x8xf32>
    %290 = tpu.matmul %289, %274, %cst_110 {dimension_numbers = #tpu.dot_dimension_numbers<[2], [1], [1], [2], [0, 0, 0, 1, 1, 2], [0], [0]>} : vector<2x8x8xf32>, vector<2x8x8xf32>, vector<2x8x8xf32> -> vector<2x8x8xf32>
    "tpu.trace_stop"() : () -> ()
    %291 = tpu.concatenate %233, %252, %271, %290 in 2 : vector<2x8x8xf32>, vector<2x8x8xf32>, vector<2x8x8xf32>, vector<2x8x8xf32> -> vector<2x8x32xf32>
    %292 = vector.shape_cast %291 : vector<2x8x32xf32> to vector<16x32xf32>
    %cst_111 = arith.constant dense<0.000000e+00> : vector<16x32xf32>
    %293 = tpu.matmul %292, %196, %cst_111 {dimension_numbers = #tpu.dot_dimension_numbers<[1], [0], [0], [1], [0, 0, 1, 1], [], []>} : vector<16x32xf32>, vector<32x32xf32>, vector<16x32xf32> -> vector<16x32xf32>
    %294 = vector.broadcast %203 : vector<1x32xf32> to vector<16x32xf32>
    %295 = arith.addf %293, %294 : vector<16x32xf32>
    %296 = arith.addf %295, %190 : vector<16x32xf32>
    %cst_112 = arith.constant dense<0.000000e+00> : vector<16xf32>
    %297 = vector.multi_reduction <add>, %296, %cst_112 [1] : vector<16x32xf32> to vector<16xf32>
    %298 = vector.shape_cast %297 : vector<16xf32> to vector<16x1xf32>
    %cst_113 = arith.constant 3.200000e+01 : f32
    %299 = vector.broadcast %cst_113 : f32 to vector<16x1xf32>
    %300 = arith.divf %298, %299 : vector<16x1xf32>
    %301 = vector.broadcast %300 : vector<16x1xf32> to vector<16x32xf32>
    %302 = arith.subf %296, %301 : vector<16x32xf32>
    %303 = arith.mulf %302, %302 : vector<16x32xf32>
    %cst_114 = arith.constant dense<0.000000e+00> : vector<16xf32>
    %304 = vector.multi_reduction <add>, %303, %cst_114 [1] : vector<16x32xf32> to vector<16xf32>
    %305 = vector.shape_cast %304 : vector<16xf32> to vector<16x1xf32>
    %cst_115 = arith.constant 3.200000e+01 : f32
    %306 = vector.broadcast %cst_115 : f32 to vector<16x1xf32>
    %307 = arith.divf %305, %306 : vector<16x1xf32>
    %308 = vector.broadcast %300 : vector<16x1xf32> to vector<16x32xf32>
    %309 = arith.subf %296, %308 : vector<16x32xf32>
    %cst_116 = arith.constant 9.99999996E-13 : f32
    %310 = vector.broadcast %cst_116 : f32 to vector<16x1xf32>
    %311 = arith.addf %307, %310 : vector<16x1xf32>
    %312 = math.rsqrt %311 : vector<16x1xf32>
    %313 = vector.broadcast %312 : vector<16x1xf32> to vector<16x32xf32>
    %314 = arith.mulf %309, %313 : vector<16x32xf32>
    %315 = vector.broadcast %204 : vector<1x32xf32> to vector<16x32xf32>
    %316 = arith.mulf %314, %315 : vector<16x32xf32>
    %317 = vector.broadcast %205 : vector<1x32xf32> to vector<16x32xf32>
    %318 = arith.addf %316, %317 : vector<16x32xf32>
    %cst_117 = arith.constant dense<0.000000e+00> : vector<16x64xf32>
    %319 = tpu.matmul %318, %198, %cst_117 {dimension_numbers = #tpu.dot_dimension_numbers<[1], [0], [0], [1], [0, 0, 1, 1], [], []>} : vector<16x32xf32>, vector<32x64xf32>, vector<16x64xf32> -> vector<16x64xf32>
    %320 = vector.broadcast %210 : vector<1x64xf32> to vector<16x64xf32>
    %321 = arith.addf %319, %320 : vector<16x64xf32>
    %cst_118 = arith.constant 5.000000e-01 : f32
    %322 = vector.broadcast %cst_118 : f32 to vector<16x64xf32>
    %323 = arith.mulf %321, %322 : vector<16x64xf32>
    %cst_119 = arith.constant 1.41421354 : f32
    %324 = vector.broadcast %cst_119 : f32 to vector<16x64xf32>
    %325 = arith.divf %321, %324 : vector<16x64xf32>
    %326 = math.erf %325 : vector<16x64xf32>
    %cst_120 = arith.constant 1.000000e+00 : f32
    %327 = vector.broadcast %cst_120 : f32 to vector<16x64xf32>
    %328 = arith.addf %327, %326 : vector<16x64xf32>
    %329 = arith.mulf %323, %328 : vector<16x64xf32>
    %cst_121 = arith.constant dense<0.000000e+00> : vector<16x32xf32>
    %330 = tpu.matmul %329, %200, %cst_121 {dimension_numbers = #tpu.dot_dimension_numbers<[1], [0], [0], [1], [0, 0, 1, 1], [], []>} : vector<16x64xf32>, vector<64x32xf32>, vector<16x32xf32> -> vector<16x32xf32>
    %331 = vector.broadcast %206 : vector<1x32xf32> to vector<16x32xf32>
    %332 = arith.addf %330, %331 : vector<16x32xf32>
    %333 = arith.addf %332, %318 : vector<16x32xf32>
    %cst_122 = arith.constant dense<0.000000e+00> : vector<16xf32>
    %334 = vector.multi_reduction <add>, %333, %cst_122 [1] : vector<16x32xf32> to vector<16xf32>
    %335 = vector.shape_cast %334 : vector<16xf32> to vector<16x1xf32>
    %cst_123 = arith.constant 3.200000e+01 : f32
    %336 = vector.broadcast %cst_123 : f32 to vector<16x1xf32>
    %337 = arith.divf %335, %336 : vector<16x1xf32>
    %338 = vector.broadcast %337 : vector<16x1xf32> to vector<16x32xf32>
    %339 = arith.subf %333, %338 : vector<16x32xf32>
    %340 = arith.mulf %339, %339 : vector<16x32xf32>
    %cst_124 = arith.constant dense<0.000000e+00> : vector<16xf32>
    %341 = vector.multi_reduction <add>, %340, %cst_124 [1] : vector<16x32xf32> to vector<16xf32>
    %342 = vector.shape_cast %341 : vector<16xf32> to vector<16x1xf32>
    %cst_125 = arith.constant 3.200000e+01 : f32
    %343 = vector.broadcast %cst_125 : f32 to vector<16x1xf32>
    %344 = arith.divf %342, %343 : vector<16x1xf32>
    %345 = vector.broadcast %337 : vector<16x1xf32> to vector<16x32xf32>
    %346 = arith.subf %333, %345 : vector<16x32xf32>
    %cst_126 = arith.constant 9.99999996E-13 : f32
    %347 = vector.broadcast %cst_126 : f32 to vector<16x1xf32>
    %348 = arith.addf %344, %347 : vector<16x1xf32>
    %349 = math.rsqrt %348 : vector<16x1xf32>
    %350 = vector.broadcast %349 : vector<16x1xf32> to vector<16x32xf32>
    %351 = arith.mulf %346, %350 : vector<16x32xf32>
    %352 = vector.broadcast %207 : vector<1x32xf32> to vector<16x32xf32>
    %353 = arith.mulf %351, %352 : vector<16x32xf32>
    %354 = vector.broadcast %208 : vector<1x32xf32> to vector<16x32xf32>
    %355 = arith.addf %353, %354 : vector<16x32xf32>
    %c0_127 = arith.constant 0 : index
    %c0_128 = arith.constant 0 : index
    %356 = vector.load %arg11[%c0_127, %c0_128] : memref<16x32xf32, #tpu.memory_space<vmem>>, vector<16x32xf32>
    tpu.vector_store %arg11[%c0_127, %c0_128], %355 {strides = array<i32>} : memref<16x32xf32, #tpu.memory_space<vmem>>, vector<16x32xf32>,
    return
  }
}

</mosaic_0001>

<llo_original>
// kernel: bert_forward.1
$region0: #{bert_forward.1}
  #allocation0 [shape = 'u32[]', space=smem, size = 0x4, offset = 0x4, fixed_abs, tag = 'smem constant byte address 0x4 - core index']
  #allocation1 [shape = 'u32[72,128]{1,0:T(1,128)}', space=vmem, size = 0x9000, scoped, tag = 'internal scratch']
  %s0 = inlined_call_operand.vmem [shape: f32[16,32], index: 0, kind: input, shape index: {}]
  %s1 = inlined_call_operand.vmem [shape: f32[2,1,8], index: 1, kind: input, shape index: {}]
  %s2 = inlined_call_operand.vmem [shape: f32[1,32], index: 2, kind: input, shape index: {}]
  %s3 = inlined_call_operand.vmem [shape: f32[1,32], index: 3, kind: input, shape index: {}]
  %s4 = inlined_call_operand.vmem [shape: f32[2,32,96], index: 4, kind: input, shape index: {}]
  %s5 = inlined_call_operand.vmem [shape: f32[2,1,96], index: 5, kind: input, shape index: {}]
  %s6 = inlined_call_operand.vmem [shape: f32[2,32,32], index: 6, kind: input, shape index: {}]
  %s7 = inlined_call_operand.vmem [shape: f32[2,32,64], index: 7, kind: input, shape index: {}]
  %s8 = inlined_call_operand.vmem [shape: f32[2,64,32], index: 8, kind: input, shape index: {}]
  %s9 = inlined_call_operand.vmem [shape: f32[2,6,32], index: 9, kind: input, shape index: {}]
  %s10 = inlined_call_operand.vmem [shape: f32[2,1,64], index: 10, kind: input, shape index: {}]
  %s11 = inlined_call_operand.hbm [shape: f32[16,32], index: 11, kind: output, shape index: {}]
  %s12 = sld [smem:[#allocation0]]
  $region54: #{bert_forward.1} parent=0
    _
  %s14 = ssub.s32 1, %s12
  %s15 = scalar_select 0, %s14, %s12
  $region1: #{bert_forward.1} parent=0
    #allocation2 [shape = 'u8[8192]{0}', space=vmem, size = 0x2000, scoped, tag = 'output window, operand 0, single buffered']
    #allocation3 [shape = 's32[1]{0}', space=sflag, size = 0x4, scoped, tag = 'scoped memory for bert_forward.1']
    %16 = vsyncpa [#allocation3], 0
    // Predicated region
    $region2: #{bert_forward.1} parent=1 // pred_check
      _
    $region3: #{bert_forward.1} parent=1 // pred_check_branch
      %18 = sbr.rel (0) target = $region5
    $region4: #{bert_forward.1} parent=1 // pred_region
      _
    $region5: #{bert_forward.1} parent=1 // pred_fallthru
      _
    // Predicated region
    $region6: #{bert_forward.1} parent=1 // pred_check
      _
    $region7: #{bert_forward.1} parent=1 // pred_check_branch
      %20 = sbr.rel (0) target = $region9
    $region8: #{bert_forward.1} parent=1 // pred_region
      _
    $region9: #{bert_forward.1} parent=1 // pred_fallthru
      _
    // Predicated region
    $region10: #{bert_forward.1} parent=1 // pred_check
      _
    $region11: #{bert_forward.1} parent=1 // pred_check_branch
      %22 = sbr.rel (0) target = $region13
    $region12: #{bert_forward.1} parent=1 // pred_region
      _
    $region13: #{bert_forward.1} parent=1 // pred_fallthru
      _
    // Predicated region
    $region14: #{bert_forward.1} parent=1 // pred_check
      _
    $region15: #{bert_forward.1} parent=1 // pred_check_branch
      %24 = sbr.rel (0) target = $region17
    $region16: #{bert_forward.1} parent=1 // pred_region
      _
    $region17: #{bert_forward.1} parent=1 // pred_fallthru
      _
    // Predicated region
    $region18: #{bert_forward.1} parent=1 // pred_check
      _
    $region19: #{bert_forward.1} parent=1 // pred_check_branch
      %26 = sbr.rel (0) target = $region21
    $region20: #{bert_forward.1} parent=1 // pred_region
      _
    $region21: #{bert_forward.1} parent=1 // pred_fallthru
      _
    // Predicated region
    $region22: #{bert_forward.1} parent=1 // pred_check
      _
    $region23: #{bert_forward.1} parent=1 // pred_check_branch
      %28 = sbr.rel (0) target = $region25
    $region24: #{bert_forward.1} parent=1 // pred_region
      _
    $region25: #{bert_forward.1} parent=1 // pred_fallthru
      _
    // Predicated region
    $region26: #{bert_forward.1} parent=1 // pred_check
      _
    $region27: #{bert_forward.1} parent=1 // pred_check_branch
      %30 = sbr.rel (0) target = $region29
    $region28: #{bert_forward.1} parent=1 // pred_region
      _
    $region29: #{bert_forward.1} parent=1 // pred_fallthru
      _
    // Predicated region
    $region30: #{bert_forward.1} parent=1 // pred_check
      _
    $region31: #{bert_forward.1} parent=1 // pred_check_branch
      %32 = sbr.rel (0) target = $region33
    $region32: #{bert_forward.1} parent=1 // pred_region
      _
    $region33: #{bert_forward.1} parent=1 // pred_fallthru
      _
    // Predicated region
    $region34: #{bert_forward.1} parent=1 // pred_check
      _
    $region35: #{bert_forward.1} parent=1 // pred_check_branch
      %34 = sbr.rel (0) target = $region37
    $region36: #{bert_forward.1} parent=1 // pred_region
      _
    $region37: #{bert_forward.1} parent=1 // pred_fallthru
      _
    // Predicated region
    $region38: #{bert_forward.1} parent=1 // pred_check
      _
    $region39: #{bert_forward.1} parent=1 // pred_check_branch
      %36 = sbr.rel (0) target = $region41
    $region40: #{bert_forward.1} parent=1 // pred_region
      _
    $region41: #{bert_forward.1} parent=1 // pred_fallthru
      _
    // Predicated region
    $region42: #{bert_forward.1} parent=1 // pred_check
      _
    $region43: #{bert_forward.1} parent=1 // pred_check_branch
      %38 = sbr.rel (0) target = $region45
    $region44: #{bert_forward.1} parent=1 // pred_region
      _
    $region45: #{bert_forward.1} parent=1 // pred_fallthru
      _
    %v39 = vld [vmem:[%s1] sm:$0x1]
    %v40 = vld [vmem:[%s1 + $0x1] sm:$0x1]
    %v41 = vld [vmem:[%s0] sm:$0xff]
    %v42 = vld [vmem:[%s0 + $0x8] sm:$0xff]
    %v43 = vld [vmem:[%s2] sm:$0x1]
    %v44 = vld [vmem:[%s3] sm:$0x1]
    %vm45 = vcmask 261120
    %v46 = vsel %vm45, %v41, 0.0
    %47 = vadd.xlane.f32.xlu0 %v46
    %v48 = vpop.xlane.xlu0 %47
    %v49 = vsel %vm45, %v42, 0.0
    %50 = vadd.xlane.f32.xlu0 %v49
    %v51 = vpop.xlane.xlu0 %50
    %v52 = vrcp.pop 32.0
    %v53 = vmul.f32 32.0, %v52
    %v54 = vsub.f32 1.0, %v53
    %v55 = vmul.f32 %v52, %v54
    %v56 = vadd.f32 %v52, %v55
    %vm57 = vweird.f32 %v52
    %v58 = vsel %vm57, %v52, %v56
    %v59 = vmul.f32 %v48, %v58
    %v60 = vmul.f32 %v51, %v58
    %v61 = vsub.f32 %v41, %v59
    %v62 = vsub.f32 %v42, %v60
    %v63 = vmul.f32 %v61, %v61
    %v64 = vmul.f32 %v62, %v62
    %v65 = vsel %vm45, %v63, 0.0
    %66 = vadd.xlane.f32.xlu0 %v65
    %v67 = vpop.xlane.xlu0 %66
    %v68 = vsel %vm45, %v64, 0.0
    %69 = vadd.xlane.f32.xlu0 %v68
    %v70 = vpop.xlane.xlu0 %69
    %v71 = vmul.f32 %v67, %v58
    %v72 = vmul.f32 %v70, %v58
    %v73 = vadd.f32 %v71, 1e-12
    %v74 = vadd.f32 %v72, 1e-12
    %v75 = vrsqrt.pop %v73
    %v76 = vmul.f32 %v75, %v73
    %v77 = vmul.f32 %v76, %v75
    %v78 = vmul.f32 0.5, %v77
    %v79 = vsub.f32 1.5, %v78
    %v80 = vmul.f32 %v75, %v79
    %vm81 = vweird.f32 %v73
    %vm82 = vweird.f32 %v75
    %vm83 = vmor %vm81, %vm82
    %v84 = vsel %vm83, %v75, %v80
    %v85 = vrsqrt.pop %v74
    %v86 = vmul.f32 %v85, %v74
    %v87 = vmul.f32 %v86, %v85
    %v88 = vmul.f32 0.5, %v87
    %v89 = vsub.f32 1.5, %v88
    %v90 = vmul.f32 %v85, %v89
    %vm91 = vweird.f32 %v74
    %vm92 = vweird.f32 %v85
    %vm93 = vmor %vm91, %vm92
    %v94 = vsel %vm93, %v85, %v90
    %v95 = vmul.f32 %v61, %v84
    %v96 = vmul.f32 %v62, %v94
    %v98 = vperm.slane %v43, 0
    %v100 = vmul.f32 %v95, %v98
    %v101 = vmul.f32 %v96, %v98
    %v103 = vperm.slane %v44, 0
    %v105 = vadd.f32 %v100, %v103
    %v106 = vadd.f32 %v101, %v103
    %v107 = vld [vmem:[%s4] sm:$0xff]
    %v108 = vld [vmem:[%s4 + $0x8] sm:$0xff]
    %v109 = vld [vmem:[%s4 + $0x10] sm:$0xff]
    %v110 = vld [vmem:[%s4 + $0x18] sm:$0xff]
    %v111 = vld [vmem:[%s5] sm:$0x1]
    %v112 = vld [vmem:[%s6] sm:$0xff]
    %v113 = vld [vmem:[%s6 + $0x8] sm:$0xff]
    %v114 = vld [vmem:[%s6 + $0x10] sm:$0xff]
    %v115 = vld [vmem:[%s6 + $0x18] sm:$0xff]
    %v116 = vld [vmem:[%s7] sm:$0xff]
    %v117 = vld [vmem:[%s7 + $0x8] sm:$0xff]
    %v118 = vld [vmem:[%s7 + $0x10] sm:$0xff]
    %v119 = vld [vmem:[%s7 + $0x18] sm:$0xff]
    %v120 = vld [vmem:[%s8] sm:$0xff]
    %v121 = vld [vmem:[%s8 + $0x8] sm:$0xff]
    %v122 = vld [vmem:[%s8 + $0x10] sm:$0xff]
    %v123 = vld [vmem:[%s8 + $0x18] sm:$0xff]
    %v124 = vld [vmem:[%s8 + $0x20] sm:$0xff]
    %v125 = vld [vmem:[%s8 + $0x28] sm:$0xff]
    %v126 = vld [vmem:[%s8 + $0x30] sm:$0xff]
    %v127 = vld [vmem:[%s8 + $0x38] sm:$0xff]
    %v128 = vld [vmem:[%s9] sm:$0x3f]
    %v129 = vld [vmem:[%s10] sm:$0x1]
    %v131 = vperm.slane %v111, 0
    %v134 = vsel %vm45, %v105, 0
    %v137 = vsel %vm45, %v106, 0
    %139 = vmatpush.msra.mxu0 0.0
    %140 = vmatpush.msra.mxu0 0.0
    %141 = vmatpush.msra.mxu0 0.0
    %142 = vmatpush.msra.mxu0 0.0
    %143 = vmatpush.msra.mxu0 0.0
    %144 = vmatpush.msra.mxu0 0.0
    %145 = vmatpush.msra.mxu0 0.0
    %146 = vmatpush.msra.mxu0 0.0
    %147 = vmatpush.msra.mxu0 0.0
    %148 = vmatpush.msra.mxu0 0.0
    %149 = vmatpush.msra.mxu0 0.0
    %150 = vmatpush.msra.mxu0 0.0
    %151 = vmatpush.msra.mxu0 %v110
    %152 = vmatpush.msra.mxu0 %v109
    %153 = vmatpush.msra.mxu0 %v108
    %154 = vmatpush.msra.mxu0 %v107
    %155 = vmatmul.f32.gmra.mxu0 %v134
    %v156 = vpop.f32.mrf.mxu0
    %v157 = vadd.f32 %v131, %v156
    %158 = vmatmul.f32.gmra.mxu0 %v137
    %v159 = vpop.f32.mrf.mxu0
    %v160 = vadd.f32 %v131, %v159
    %161 = vdwg.mxu0
    %163 = vrot.lane.b32.xlu0 %v157, 96
    %v164 = vpop.permute.xlu0 %163
    %vm165 = vcmask 64512
    %v166 = vsel %vm165, %v157, 0
    %v168 = vsel %vm165, %v164, 0
    %170 = vmatpush.xpose.msra.mxu0 0.0
    %171 = vmatpush.xpose.msra.mxu0 0.0
    %172 = vmatpush.xpose.msra.mxu0 0.0
    %173 = vmatpush.xpose.msra.mxu0 0.0
    %174 = vmatpush.xpose.msra.mxu0 0.0
    %175 = vmatpush.xpose.msra.mxu0 0.0
    %176 = vmatpush.xpose.msra.mxu0 0.0
    %177 = vmatpush.xpose.msra.mxu0 0.0
    %178 = vmatpush.xpose.msra.mxu0 0.0
    %179 = vmatpush.xpose.msra.mxu0 0.0
    %180 = vmatpush.xpose.msra.mxu0 0.0
    %181 = vmatpush.xpose.msra.mxu0 0.0
    %182 = vmatpush.xpose.msra.mxu0 0.0
    %183 = vmatpush.xpose.msra.mxu0 0.0
    %184 = vmatpush.xpose.msra.mxu0 0.0
    %185 = vmatpush.xpose.msra.mxu0 %v168
    %186 = vmatmul.f32.gmra.mxu0 %v166
    %v187 = vpop.f32.mrf.mxu0
    %v188 = vadd.f32 0.0, %v187
    %189 = vdwg.mxu0
    %191 = vrot.lane.b32.xlu0 %v160, 96
    %v192 = vpop.permute.xlu0 %191
    %v193 = vsel %vm165, %v160, 0
    %v195 = vsel %vm165, %v192, 0
    %197 = vmatpush.xpose.msra.mxu0 0.0
    %198 = vmatpush.xpose.msra.mxu0 0.0
    %199 = vmatpush.xpose.msra.mxu0 0.0
    %200 = vmatpush.xpose.msra.mxu0 0.0
    %201 = vmatpush.xpose.msra.mxu0 0.0
    %202 = vmatpush.xpose.msra.mxu0 0.0
    %203 = vmatpush.xpose.msra.mxu0 0.0
    %204 = vmatpush.xpose.msra.mxu0 0.0
    %205 = vmatpush.xpose.msra.mxu0 0.0
    %206 = vmatpush.xpose.msra.mxu0 0.0
    %207 = vmatpush.xpose.msra.mxu0 0.0
    %208 = vmatpush.xpose.msra.mxu0 0.0
    %209 = vmatpush.xpose.msra.mxu0 0.0
    %210 = vmatpush.xpose.msra.mxu0 0.0
    %211 = vmatpush.xpose.msra.mxu0 0.0
    %212 = vmatpush.xpose.msra.mxu0 %v195
    %213 = vmatmul.f32.gmra.mxu0 %v193
    %v214 = vpop.f32.mrf.mxu0
    %v215 = vadd.f32 0.0, %v214
    %216 = vdwg.mxu0
    %v217 = vmul.f32 %v188, 0.35355338
    %v218 = vmul.f32 %v215, 0.35355338
    %v221 = vperm.slane %v39, 0
    %v222 = vperm.slane %v40, 0
    %v225 = vadd.f32 %v217, %v221
    %v226 = vadd.f32 %v218, %v222
    %v227 = vsel %vm165, %v225, -inf
    %228 = vmax.xlane.f32.xlu0 %v227
    %v229 = vpop.xlane.xlu0 %228
    %v230 = vsel %vm165, %v226, -inf
    %231 = vmax.xlane.f32.xlu0 %v230
    %v232 = vpop.xlane.xlu0 %231
    %v233 = vsub.f32 %v225, %v229
    %v234 = vsub.f32 %v226, %v232
    %v235 = vmul.f32 %v233, 1.442695
    %v236 = vpow.pop %v235
    %v237 = vmul.f32 %v234, 1.442695
    %v238 = vpow.pop %v237
    %v239 = vsel %vm165, %v236, 0.0
    %240 = vadd.xlane.f32.xlu0 %v239
    %v241 = vpop.xlane.xlu0 %240
    %v242 = vsel %vm165, %v238, 0.0
    %243 = vadd.xlane.f32.xlu0 %v242
    %v244 = vpop.xlane.xlu0 %243
    %v245 = vrcp.pop %v241
    %v246 = vrcp.pop %v244
    %v247 = vmul.f32 %v236, %v245
    %v248 = vmul.f32 %v238, %v246
    %249 = vrot.lane.b32.xlu0 %v157, 64
    %v250 = vpop.permute.xlu0 %249
    %v253 = vsel %vm165, %v247, 0
    %255 = vmatpush.msra.mxu0 0.0
    %256 = vmatpush.msra.mxu0 0.0
    %257 = vmatpush.msra.mxu0 0.0
    %258 = vmatpush.msra.mxu0 0.0
    %259 = vmatpush.msra.mxu0 0.0
    %260 = vmatpush.msra.mxu0 0.0
    %261 = vmatpush.msra.mxu0 0.0
    %262 = vmatpush.msra.mxu0 0.0
    %263 = vmatpush.msra.mxu0 0.0
    %264 = vmatpush.msra.mxu0 0.0
    %265 = vmatpush.msra.mxu0 0.0
    %266 = vmatpush.msra.mxu0 0.0
    %267 = vmatpush.msra.mxu0 0.0
    %268 = vmatpush.msra.mxu0 0.0
    %269 = vmatpush.msra.mxu0 0.0
    %270 = vmatpush.msra.mxu0 %v250
    %271 = vmatmul.f32.gmra.mxu0 %v253
    %v272 = vpop.f32.mrf.mxu0
    %v273 = vadd.f32 0.0, %v272
    %274 = vdwg.mxu0
    %275 = vrot.lane.b32.xlu0 %v160, 64
    %v276 = vpop.permute.xlu0 %275
    %v279 = vsel %vm165, %v248, 0
    %281 = vmatpush.msra.mxu0 0.0
    %282 = vmatpush.msra.mxu0 0.0
    %283 = vmatpush.msra.mxu0 0.0
    %284 = vmatpush.msra.mxu0 0.0
    %285 = vmatpush.msra.mxu0 0.0
    %286 = vmatpush.msra.mxu0 0.0
    %287 = vmatpush.msra.mxu0 0.0
    %288 = vmatpush.msra.mxu0 0.0
    %289 = vmatpush.msra.mxu0 0.0
    %290 = vmatpush.msra.mxu0 0.0
    %291 = vmatpush.msra.mxu0 0.0
    %292 = vmatpush.msra.mxu0 0.0
    %293 = vmatpush.msra.mxu0 0.0
    %294 = vmatpush.msra.mxu0 0.0
    %295 = vmatpush.msra.mxu0 0.0
    %296 = vmatpush.msra.mxu0 %v276
    %297 = vmatmul.f32.gmra.mxu0 %v279
    %v298 = vpop.f32.mrf.mxu0
    %v299 = vadd.f32 0.0, %v298
    %300 = vdwg.mxu0
    %301 = vrot.lane.b32.xlu0 %v157, 120
    %v302 = vpop.permute.xlu0 %301
    %303 = vrot.lane.b32.xlu0 %v157, 88
    %v304 = vpop.permute.xlu0 %303
    %v305 = vsel %vm165, %v302, 0
    %v307 = vsel %vm165, %v304, 0
    %309 = vmatpush.xpose.msra.mxu0 0.0
    %310 = vmatpush.xpose.msra.mxu0 0.0
    %311 = vmatpush.xpose.msra.mxu0 0.0
    %312 = vmatpush.xpose.msra.mxu0 0.0
    %313 = vmatpush.xpose.msra.mxu0 0.0
    %314 = vmatpush.xpose.msra.mxu0 0.0
    %315 = vmatpush.xpose.msra.mxu0 0.0
    %316 = vmatpush.xpose.msra.mxu0 0.0
    %317 = vmatpush.xpose.msra.mxu0 0.0
    %318 = vmatpush.xpose.msra.mxu0 0.0
    %319 = vmatpush.xpose.msra.mxu0 0.0
    %320 = vmatpush.xpose.msra.mxu0 0.0
    %321 = vmatpush.xpose.msra.mxu0 0.0
    %322 = vmatpush.xpose.msra.mxu0 0.0
    %323 = vmatpush.xpose.msra.mxu0 0.0
    %324 = vmatpush.xpose.msra.mxu0 %v307
    %325 = vmatmul.f32.gmra.mxu0 %v305
    %v326 = vpop.f32.mrf.mxu0
    %v327 = vadd.f32 0.0, %v326
    %328 = vdwg.mxu0
    %329 = vrot.lane.b32.xlu0 %v160, 120
    %v330 = vpop.permute.xlu0 %329
    %331 = vrot.lane.b32.xlu0 %v160, 88
    %v332 = vpop.permute.xlu0 %331
    %v333 = vsel %vm165, %v330, 0
    %v335 = vsel %vm165, %v332, 0
    %337 = vmatpush.xpose.msra.mxu0 0.0
    %338 = vmatpush.xpose.msra.mxu0 0.0
    %339 = vmatpush.xpose.msra.mxu0 0.0
    %340 = vmatpush.xpose.msra.mxu0 0.0
    %341 = vmatpush.xpose.msra.mxu0 0.0
    %342 = vmatpush.xpose.msra.mxu0 0.0
    %343 = vmatpush.xpose.msra.mxu0 0.0
    %344 = vmatpush.xpose.msra.mxu0 0.0
    %345 = vmatpush.xpose.msra.mxu0 0.0
    %346 = vmatpush.xpose.msra.mxu0 0.0
    %347 = vmatpush.xpose.msra.mxu0 0.0
    %348 = vmatpush.xpose.msra.mxu0 0.0
    %349 = vmatpush.xpose.msra.mxu0 0.0
    %350 = vmatpush.xpose.msra.mxu0 0.0
    %351 = vmatpush.xpose.msra.mxu0 0.0
    %352 = vmatpush.xpose.msra.mxu0 %v335
    %353 = vmatmul.f32.gmra.mxu0 %v333
    %v354 = vpop.f32.mrf.mxu0
    %v355 = vadd.f32 0.0, %v354
    %356 = vdwg.mxu0
    %v357 = vmul.f32 %v327, 0.35355338
    %v358 = vmul.f32 %v355, 0.35355338
    %v359 = vadd.f32 %v357, %v221
    %v360 = vadd.f32 %v358, %v222
    %v361 = vsel %vm165, %v359, -inf
    %362 = vmax.xlane.f32.xlu0 %v361
    %v363 = vpop.xlane.xlu0 %362
    %v364 = vsel %vm165, %v360, -inf
    %365 = vmax.xlane.f32.xlu0 %v364
    %v366 = vpop.xlane.xlu0 %365
    %v367 = vsub.f32 %v359, %v363
    %v368 = vsub.f32 %v360, %v366
    %v369 = vmul.f32 %v367, 1.442695
    %v370 = vpow.pop %v369
    %v371 = vmul.f32 %v368, 1.442695
    %v372 = vpow.pop %v371
    %v373 = vsel %vm165, %v370, 0.0
    %374 = vadd.xlane.f32.xlu0 %v373
    %v375 = vpop.xlane.xlu0 %374
    %v376 = vsel %vm165, %v372, 0.0
    %377 = vadd.xlane.f32.xlu0 %v376
    %v378 = vpop.xlane.xlu0 %377
    %v379 = vrcp.pop %v375
    %v380 = vrcp.pop %v378
    %v381 = vmul.f32 %v370, %v379
    %v382 = vmul.f32 %v372, %v380
    %383 = vrot.lane.b32.xlu0 %v157, 56
    %v384 = vpop.permute.xlu0 %383
    %v387 = vsel %vm165, %v381, 0
    %389 = vmatpush.msra.mxu0 0.0
    %390 = vmatpush.msra.mxu0 0.0
    %391 = vmatpush.msra.mxu0 0.0
    %392 = vmatpush.msra.mxu0 0.0
    %393 = vmatpush.msra.mxu0 0.0
    %394 = vmatpush.msra.mxu0 0.0
    %395 = vmatpush.msra.mxu0 0.0
    %396 = vmatpush.msra.mxu0 0.0
    %397 = vmatpush.msra.mxu0 0.0
    %398 = vmatpush.msra.mxu0 0.0
    %399 = vmatpush.msra.mxu0 0.0
    %400 = vmatpush.msra.mxu0 0.0
    %401 = vmatpush.msra.mxu0 0.0
    %402 = vmatpush.msra.mxu0 0.0
    %403 = vmatpush.msra.mxu0 0.0
    %404 = vmatpush.msra.mxu0 %v384
    %405 = vmatmul.f32.gmra.mxu0 %v387
    %v406 = vpop.f32.mrf.mxu0
    %v407 = vadd.f32 0.0, %v406
    %408 = vdwg.mxu0
    %409 = vrot.lane.b32.xlu0 %v160, 56
    %v410 = vpop.permute.xlu0 %409
    %v413 = vsel %vm165, %v382, 0
    %415 = vmatpush.msra.mxu0 0.0
    %416 = vmatpush.msra.mxu0 0.0
    %417 = vmatpush.msra.mxu0 0.0
    %418 = vmatpush.msra.mxu0 0.0
    %419 = vmatpush.msra.mxu0 0.0
    %420 = vmatpush.msra.mxu0 0.0
    %421 = vmatpush.msra.mxu0 0.0
    %422 = vmatpush.msra.mxu0 0.0
    %423 = vmatpush.msra.mxu0 0.0
    %424 = vmatpush.msra.mxu0 0.0
    %425 = vmatpush.msra.mxu0 0.0
    %426 = vmatpush.msra.mxu0 0.0
    %427 = vmatpush.msra.mxu0 0.0
    %428 = vmatpush.msra.mxu0 0.0
    %429 = vmatpush.msra.mxu0 0.0
    %430 = vmatpush.msra.mxu0 %v410
    %431 = vmatmul.f32.gmra.mxu0 %v413
    %v432 = vpop.f32.mrf.mxu0
    %v433 = vadd.f32 0.0, %v432
    %434 = vdwg.mxu0
    %435 = vrot.lane.b32.xlu0 %v157, 112
    %v436 = vpop.permute.xlu0 %435
    %437 = vrot.lane.b32.xlu0 %v157, 80
    %v438 = vpop.permute.xlu0 %437
    %v439 = vsel %vm165, %v436, 0
    %v441 = vsel %vm165, %v438, 0
    %443 = vmatpush.xpose.msra.mxu0 0.0
    %444 = vmatpush.xpose.msra.mxu0 0.0
    %445 = vmatpush.xpose.msra.mxu0 0.0
    %446 = vmatpush.xpose.msra.mxu0 0.0
    %447 = vmatpush.xpose.msra.mxu0 0.0
    %448 = vmatpush.xpose.msra.mxu0 0.0
    %449 = vmatpush.xpose.msra.mxu0 0.0
    %450 = vmatpush.xpose.msra.mxu0 0.0
    %451 = vmatpush.xpose.msra.mxu0 0.0
    %452 = vmatpush.xpose.msra.mxu0 0.0
    %453 = vmatpush.xpose.msra.mxu0 0.0
    %454 = vmatpush.xpose.msra.mxu0 0.0
    %455 = vmatpush.xpose.msra.mxu0 0.0
    %456 = vmatpush.xpose.msra.mxu0 0.0
    %457 = vmatpush.xpose.msra.mxu0 0.0
    %458 = vmatpush.xpose.msra.mxu0 %v441
    %459 = vmatmul.f32.gmra.mxu0 %v439
    %v460 = vpop.f32.mrf.mxu0
    %v461 = vadd.f32 0.0, %v460
    %462 = vdwg.mxu0
    %463 = vrot.lane.b32.xlu0 %v160, 112
    %v464 = vpop.permute.xlu0 %463
    %465 = vrot.lane.b32.xlu0 %v160, 80
    %v466 = vpop.permute.xlu0 %465
    %v467 = vsel %vm165, %v464, 0
    %v469 = vsel %vm165, %v466, 0
    %471 = vmatpush.xpose.msra.mxu0 0.0
    %472 = vmatpush.xpose.msra.mxu0 0.0
    %473 = vmatpush.xpose.msra.mxu0 0.0
    %474 = vmatpush.xpose.msra.mxu0 0.0
    %475 = vmatpush.xpose.msra.mxu0 0.0
    %476 = vmatpush.xpose.msra.mxu0 0.0
    %477 = vmatpush.xpose.msra.mxu0 0.0
    %478 = vmatpush.xpose.msra.mxu0 0.0
    %479 = vmatpush.xpose.msra.mxu0 0.0
    %480 = vmatpush.xpose.msra.mxu0 0.0
    %481 = vmatpush.xpose.msra.mxu0 0.0
    %482 = vmatpush.xpose.msra.mxu0 0.0
    %483 = vmatpush.xpose.msra.mxu0 0.0
    %484 = vmatpush.xpose.msra.mxu0 0.0
    %485 = vmatpush.xpose.msra.mxu0 0.0
    %486 = vmatpush.xpose.msra.mxu0 %v469
    %487 = vmatmul.f32.gmra.mxu0 %v467
    %v488 = vpop.f32.mrf.mxu0
    %v489 = vadd.f32 0.0, %v488
    %490 = vdwg.mxu0
    %v491 = vmul.f32 %v461, 0.35355338
    %v492 = vmul.f32 %v489, 0.35355338
    %v493 = vadd.f32 %v491, %v221
    %v494 = vadd.f32 %v492, %v222
    %v495 = vsel %vm165, %v493, -inf
    %496 = vmax.xlane.f32.xlu0 %v495
    %v497 = vpop.xlane.xlu0 %496
    %v498 = vsel %vm165, %v494, -inf
    %499 = vmax.xlane.f32.xlu0 %v498
    %v500 = vpop.xlane.xlu0 %499
    %v501 = vsub.f32 %v493, %v497
    %v502 = vsub.f32 %v494, %v500
    %v503 = vmul.f32 %v501, 1.442695
    %v504 = vpow.pop %v503
    %v505 = vmul.f32 %v502, 1.442695
    %v506 = vpow.pop %v505
    %v507 = vsel %vm165, %v504, 0.0
    %508 = vadd.xlane.f32.xlu0 %v507
    %v509 = vpop.xlane.xlu0 %508
    %v510 = vsel %vm165, %v506, 0.0
    %511 = vadd.xlane.f32.xlu0 %v510
    %v512 = vpop.xlane.xlu0 %511
    %v513 = vrcp.pop %v509
    %v514 = vrcp.pop %v512
    %v515 = vmul.f32 %v504, %v513
    %v516 = vmul.f32 %v506, %v514
    %517 = vrot.lane.b32.xlu0 %v157, 48
    %v518 = vpop.permute.xlu0 %517
    %v521 = vsel %vm165, %v515, 0
    %523 = vmatpush.msra.mxu0 0.0
    %524 = vmatpush.msra.mxu0 0.0
    %525 = vmatpush.msra.mxu0 0.0
    %526 = vmatpush.msra.mxu0 0.0
    %527 = vmatpush.msra.mxu0 0.0
    %528 = vmatpush.msra.mxu0 0.0
    %529 = vmatpush.msra.mxu0 0.0
    %530 = vmatpush.msra.mxu0 0.0
    %531 = vmatpush.msra.mxu0 0.0
    %532 = vmatpush.msra.mxu0 0.0
    %533 = vmatpush.msra.mxu0 0.0
    %534 = vmatpush.msra.mxu0 0.0
    %535 = vmatpush.msra.mxu0 0.0
    %536 = vmatpush.msra.mxu0 0.0
    %537 = vmatpush.msra.mxu0 0.0
    %538 = vmatpush.msra.mxu0 %v518
    %539 = vmatmul.f32.gmra.mxu0 %v521
    %v540 = vpop.f32.mrf.mxu0
    %v541 = vadd.f32 0.0, %v540
    %542 = vdwg.mxu0
    %543 = vrot.lane.b32.xlu0 %v160, 48
    %v544 = vpop.permute.xlu0 %543
    %v547 = vsel %vm165, %v516, 0
    %549 = vmatpush.msra.mxu0 0.0
    %550 = vmatpush.msra.mxu0 0.0
    %551 = vmatpush.msra.mxu0 0.0
    %552 = vmatpush.msra.mxu0 0.0
    %553 = vmatpush.msra.mxu0 0.0
    %554 = vmatpush.msra.mxu0 0.0
    %555 = vmatpush.msra.mxu0 0.0
    %556 = vmatpush.msra.mxu0 0.0
    %557 = vmatpush.msra.mxu0 0.0
    %558 = vmatpush.msra.mxu0 0.0
    %559 = vmatpush.msra.mxu0 0.0
    %560 = vmatpush.msra.mxu0 0.0
    %561 = vmatpush.msra.mxu0 0.0
    %562 = vmatpush.msra.mxu0 0.0
    %563 = vmatpush.msra.mxu0 0.0
    %564 = vmatpush.msra.mxu0 %v544
    %565 = vmatmul.f32.gmra.mxu0 %v547
    %v566 = vpop.f32.mrf.mxu0
    %v567 = vadd.f32 0.0, %v566
    %568 = vdwg.mxu0
    %569 = vrot.lane.b32.xlu0 %v157, 104
    %v570 = vpop.permute.xlu0 %569
    %571 = vrot.lane.b32.xlu0 %v157, 72
    %v572 = vpop.permute.xlu0 %571
    %v573 = vsel %vm165, %v570, 0
    %v575 = vsel %vm165, %v572, 0
    %577 = vmatpush.xpose.msra.mxu0 0.0
    %578 = vmatpush.xpose.msra.mxu0 0.0
    %579 = vmatpush.xpose.msra.mxu0 0.0
    %580 = vmatpush.xpose.msra.mxu0 0.0
    %581 = vmatpush.xpose.msra.mxu0 0.0
    %582 = vmatpush.xpose.msra.mxu0 0.0
    %583 = vmatpush.xpose.msra.mxu0 0.0
    %584 = vmatpush.xpose.msra.mxu0 0.0
    %585 = vmatpush.xpose.msra.mxu0 0.0
    %586 = vmatpush.xpose.msra.mxu0 0.0
    %587 = vmatpush.xpose.msra.mxu0 0.0
    %588 = vmatpush.xpose.msra.mxu0 0.0
    %589 = vmatpush.xpose.msra.mxu0 0.0
    %590 = vmatpush.xpose.msra.mxu0 0.0
    %591 = vmatpush.xpose.msra.mxu0 0.0
    %592 = vmatpush.xpose.msra.mxu0 %v575
    %593 = vmatmul.f32.gmra.mxu0 %v573
    %v594 = vpop.f32.mrf.mxu0
    %v595 = vadd.f32 0.0, %v594
    %596 = vdwg.mxu0
    %597 = vrot.lane.b32.xlu0 %v160, 104
    %v598 = vpop.permute.xlu0 %597
    %599 = vrot.lane.b32.xlu0 %v160, 72
    %v600 = vpop.permute.xlu0 %599
    %v601 = vsel %vm165, %v598, 0
    %v603 = vsel %vm165, %v600, 0
    %605 = vmatpush.xpose.msra.mxu0 0.0
    %606 = vmatpush.xpose.msra.mxu0 0.0
    %607 = vmatpush.xpose.msra.mxu0 0.0
    %608 = vmatpush.xpose.msra.mxu0 0.0
    %609 = vmatpush.xpose.msra.mxu0 0.0
    %610 = vmatpush.xpose.msra.mxu0 0.0
    %611 = vmatpush.xpose.msra.mxu0 0.0
    %612 = vmatpush.xpose.msra.mxu0 0.0
    %613 = vmatpush.xpose.msra.mxu0 0.0
    %614 = vmatpush.xpose.msra.mxu0 0.0
    %615 = vmatpush.xpose.msra.mxu0 0.0
    %616 = vmatpush.xpose.msra.mxu0 0.0
    %617 = vmatpush.xpose.msra.mxu0 0.0
    %618 = vmatpush.xpose.msra.mxu0 0.0
    %619 = vmatpush.xpose.msra.mxu0 0.0
    %620 = vmatpush.xpose.msra.mxu0 %v603
    %621 = vmatmul.f32.gmra.mxu0 %v601
    %v622 = vpop.f32.mrf.mxu0
    %v623 = vadd.f32 0.0, %v622
    %624 = vdwg.mxu0
    %v625 = vmul.f32 %v595, 0.35355338
    %v626 = vmul.f32 %v623, 0.35355338
    %v627 = vadd.f32 %v625, %v221
    %v628 = vadd.f32 %v626, %v222
    %v629 = vsel %vm165, %v627, -inf
    %630 = vmax.xlane.f32.xlu0 %v629
    %v631 = vpop.xlane.xlu0 %630
    %v632 = vsel %vm165, %v628, -inf
    %633 = vmax.xlane.f32.xlu0 %v632
    %v634 = vpop.xlane.xlu0 %633
    %v635 = vsub.f32 %v627, %v631
    %v636 = vsub.f32 %v628, %v634
    %v637 = vmul.f32 %v635, 1.442695
    %v638 = vpow.pop %v637
    %v639 = vmul.f32 %v636, 1.442695
    %v640 = vpow.pop %v639
    %v641 = vsel %vm165, %v638, 0.0
    %642 = vadd.xlane.f32.xlu0 %v641
    %v643 = vpop.xlane.xlu0 %642
    %v644 = vsel %vm165, %v640, 0.0
    %645 = vadd.xlane.f32.xlu0 %v644
    %v646 = vpop.xlane.xlu0 %645
    %v647 = vrcp.pop %v643
    %v648 = vrcp.pop %v646
    %v649 = vmul.f32 %v638, %v647
    %v650 = vmul.f32 %v640, %v648
    %651 = vrot.lane.b32.xlu0 %v157, 40
    %v652 = vpop.permute.xlu0 %651
    %v655 = vsel %vm165, %v649, 0
    %657 = vmatpush.msra.mxu0 0.0
    %658 = vmatpush.msra.mxu0 0.0
    %659 = vmatpush.msra.mxu0 0.0
    %660 = vmatpush.msra.mxu0 0.0
    %661 = vmatpush.msra.mxu0 0.0
    %662 = vmatpush.msra.mxu0 0.0
    %663 = vmatpush.msra.mxu0 0.0
    %664 = vmatpush.msra.mxu0 0.0
    %665 = vmatpush.msra.mxu0 0.0
    %666 = vmatpush.msra.mxu0 0.0
    %667 = vmatpush.msra.mxu0 0.0
    %668 = vmatpush.msra.mxu0 0.0
    %669 = vmatpush.msra.mxu0 0.0
    %670 = vmatpush.msra.mxu0 0.0
    %671 = vmatpush.msra.mxu0 0.0
    %672 = vmatpush.msra.mxu0 %v652
    %673 = vmatmul.f32.gmra.mxu0 %v655
    %v674 = vpop.f32.mrf.mxu0
    %v675 = vadd.f32 0.0, %v674
    %676 = vdwg.mxu0
    %677 = vrot.lane.b32.xlu0 %v160, 40
    %v678 = vpop.permute.xlu0 %677
    %v681 = vsel %vm165, %v650, 0
    %683 = vmatpush.msra.mxu0 0.0
    %684 = vmatpush.msra.mxu0 0.0
    %685 = vmatpush.msra.mxu0 0.0
    %686 = vmatpush.msra.mxu0 0.0
    %687 = vmatpush.msra.mxu0 0.0
    %688 = vmatpush.msra.mxu0 0.0
    %689 = vmatpush.msra.mxu0 0.0
    %690 = vmatpush.msra.mxu0 0.0
    %691 = vmatpush.msra.mxu0 0.0
    %692 = vmatpush.msra.mxu0 0.0
    %693 = vmatpush.msra.mxu0 0.0
    %694 = vmatpush.msra.mxu0 0.0
    %695 = vmatpush.msra.mxu0 0.0
    %696 = vmatpush.msra.mxu0 0.0
    %697 = vmatpush.msra.mxu0 0.0
    %698 = vmatpush.msra.mxu0 %v678
    %699 = vmatmul.f32.gmra.mxu0 %v681
    %v700 = vpop.f32.mrf.mxu0
    %v701 = vadd.f32 0.0, %v700
    %702 = vdwg.mxu0
    %705 = vrot.lane.b32.xlu0 %v407, 8
    %v706 = vpop.permute.xlu0 %705
    %707 = vrot.lane.b32.xlu0 %v433, 8
    %v708 = vpop.permute.xlu0 %707
    %713 = vrot.lane.b32.xlu0 %v541, 16
    %v714 = vpop.permute.xlu0 %713
    %715 = vrot.lane.b32.xlu0 %v567, 16
    %v716 = vpop.permute.xlu0 %715
    %721 = vrot.lane.b32.xlu0 %v675, 24
    %v722 = vpop.permute.xlu0 %721
    %723 = vrot.lane.b32.xlu0 %v701, 24
    %v724 = vpop.permute.xlu0 %723
    %v727 = vsel %vm165, %v273, %v706
    %v728 = vsel %vm165, %v299, %v708
    %vm729 = vcmask 130048
    %v730 = vsel %vm729, %v727, %v714
    %v731 = vsel %vm729, %v728, %v716
    %vm732 = vcmask 195584
    %v733 = vsel %vm732, %v730, %v722
    %v734 = vsel %vm732, %v731, %v724
    %v735 = vperm.slane %v128, 0
    %v737 = vsel %vm45, %v733, 0
    %v740 = vsel %vm45, %v734, 0
    %742 = vmatpush.msra.mxu0 0.0
    %743 = vmatpush.msra.mxu0 0.0
    %744 = vmatpush.msra.mxu0 0.0
    %745 = vmatpush.msra.mxu0 0.0
    %746 = vmatpush.msra.mxu0 0.0
    %747 = vmatpush.msra.mxu0 0.0
    %748 = vmatpush.msra.mxu0 0.0
    %749 = vmatpush.msra.mxu0 0.0
    %750 = vmatpush.msra.mxu0 0.0
    %751 = vmatpush.msra.mxu0 0.0
    %752 = vmatpush.msra.mxu0 0.0
    %753 = vmatpush.msra.mxu0 0.0
    %754 = vmatpush.msra.mxu0 %v115
    %755 = vmatpush.msra.mxu0 %v114
    %756 = vmatpush.msra.mxu0 %v113
    %757 = vmatpush.msra.mxu0 %v112
    %758 = vmatmul.f32.gmra.mxu0 %v737
    %v759 = vpop.f32.mrf.mxu0
    %v760 = vadd.f32 %v735, %v759
    %761 = vmatmul.f32.gmra.mxu0 %v740
    %v762 = vpop.f32.mrf.mxu0
    %v763 = vadd.f32 %v735, %v762
    %764 = vdwg.mxu0
    %v765 = vadd.f32 %v760, %v105
    %v766 = vadd.f32 %v763, %v106
    %v767 = vsel %vm45, %v765, 0.0
    %768 = vadd.xlane.f32.xlu0 %v767
    %v769 = vpop.xlane.xlu0 %768
    %v770 = vsel %vm45, %v766, 0.0
    %771 = vadd.xlane.f32.xlu0 %v770
    %v772 = vpop.xlane.xlu0 %771
    %v773 = vmul.f32 %v769, %v58
    %v774 = vmul.f32 %v772, %v58
    %v775 = vsub.f32 %v765, %v773
    %v776 = vsub.f32 %v766, %v774
    %v777 = vmul.f32 %v775, %v775
    %v778 = vmul.f32 %v776, %v776
    %v779 = vsel %vm45, %v777, 0.0
    %780 = vadd.xlane.f32.xlu0 %v779
    %v781 = vpop.xlane.xlu0 %780
    %v782 = vsel %vm45, %v778, 0.0
    %783 = vadd.xlane.f32.xlu0 %v782
    %v784 = vpop.xlane.xlu0 %783
    %v785 = vmul.f32 %v781, %v58
    %v786 = vmul.f32 %v784, %v58
    %v787 = vadd.f32 %v785, 1e-12
    %v788 = vadd.f32 %v786, 1e-12
    %v789 = vrsqrt.pop %v787
    %v790 = vmul.f32 %v789, %v787
    %v791 = vmul.f32 %v790, %v789
    %v792 = vmul.f32 0.5, %v791
    %v793 = vsub.f32 1.5, %v792
    %v794 = vmul.f32 %v789, %v793
    %vm795 = vweird.f32 %v787
    %vm796 = vweird.f32 %v789
    %vm797 = vmor %vm795, %vm796
    %v798 = vsel %vm797, %v789, %v794
    %v799 = vrsqrt.pop %v788
    %v800 = vmul.f32 %v799, %v788
    %v801 = vmul.f32 %v800, %v799
    %v802 = vmul.f32 0.5, %v801
    %v803 = vsub.f32 1.5, %v802
    %v804 = vmul.f32 %v799, %v803
    %vm805 = vweird.f32 %v788
    %vm806 = vweird.f32 %v799
    %vm807 = vmor %vm805, %vm806
    %v808 = vsel %vm807, %v799, %v804
    %v809 = vmul.f32 %v775, %v798
    %v810 = vmul.f32 %v776, %v808
    %v811 = vperm.slane %v128, 1
    %v812 = vmul.f32 %v809, %v811
    %v813 = vmul.f32 %v810, %v811
    %v814 = vperm.slane %v128, 2
    %v815 = vadd.f32 %v812, %v814
    %v816 = vadd.f32 %v813, %v814
    %v818 = vperm.slane %v129, 0
    %v821 = vsel %vm45, %v815, 0
    %v824 = vsel %vm45, %v816, 0
    %826 = vmatpush.msra.mxu0 0.0
    %827 = vmatpush.msra.mxu0 0.0
    %828 = vmatpush.msra.mxu0 0.0
    %829 = vmatpush.msra.mxu0 0.0
    %830 = vmatpush.msra.mxu0 0.0
    %831 = vmatpush.msra.mxu0 0.0
    %832 = vmatpush.msra.mxu0 0.0
    %833 = vmatpush.msra.mxu0 0.0
    %834 = vmatpush.msra.mxu0 0.0
    %835 = vmatpush.msra.mxu0 0.0
    %836 = vmatpush.msra.mxu0 0.0
    %837 = vmatpush.msra.mxu0 0.0
    %838 = vmatpush.msra.mxu0 %v119
    %839 = vmatpush.msra.mxu0 %v118
    %840 = vmatpush.msra.mxu0 %v117
    %841 = vmatpush.msra.mxu0 %v116
    %842 = vmatmul.f32.gmra.mxu0 %v821
    %v843 = vpop.f32.mrf.mxu0
    %v844 = vadd.f32 %v818, %v843
    %845 = vmatmul.f32.gmra.mxu0 %v824
    %v846 = vpop.f32.mrf.mxu0
    %v847 = vadd.f32 %v818, %v846
    %848 = vdwg.mxu0
    %v849 = vmul.f32 %v844, 0.5
    %v850 = vmul.f32 %v847, 0.5
    %v851 = vrcp.pop 1.4142135
    %v852 = vmul.f32 1.4142135, %v851
    %v853 = vsub.f32 1.0, %v852
    %v854 = vmul.f32 %v851, %v853
    %v855 = vadd.f32 %v851, %v854
    %vm856 = vweird.f32 %v851
    %v857 = vsel %vm856, %v851, %v855
    %v858 = vmul.f32 %v844, %v857
    %v859 = vmul.f32 %v847, %v857
    %v860 = vmul.f32 %v858, %v858
    %v861 = vmin.f32 16.0, %v860
    %v862 = vmul.f32 %v861, 2.1237322e-06
    %v863 = vadd.f32 %v862, 0.00028619796
    %v864 = vmul.f32 %v861, %v863
    %v865 = vadd.f32 %v864, 0.0036580483
    %v866 = vmul.f32 %v861, %v865
    %v867 = vadd.f32 %v866, 0.05243302
    %v868 = vmul.f32 %v861, %v867
    %v869 = vadd.f32 %v868, 0.18741608
    %v870 = vmul.f32 %v861, %v869
    %v871 = vadd.f32 %v870, 1.1283791
    %v872 = vmul.f32 %v858, %v871
    %v873 = vmul.f32 %v861, 3.8918573e-05
    %v874 = vadd.f32 %v873, 0.001143296
    %v875 = vmul.f32 %v861, %v874
    %v876 = vadd.f32 %v875, 0.014752088
    %v877 = vmul.f32 %v861, %v876
    %v878 = vadd.f32 %v877, 0.112945676
    %v879 = vmul.f32 %v861, %v878
    %v880 = vadd.f32 %v879, 0.4994258
    %v881 = vmul.f32 %v861, %v880
    %v882 = vadd.f32 %v881, 1.0
    %v883 = vrcp.pop %v882
    %v884 = vmul.f32 %v882, %v883
    %v885 = vsub.f32 1.0, %v884
    %v886 = vmul.f32 %v883, %v885
    %v887 = vadd.f32 %v883, %v886
    %vm888 = vweird.f32 %v882
    %vm889 = vweird.f32 %v883
    %vm890 = vmor %vm888, %vm889
    %v891 = vsel %vm890, %v883, %v887
    %v892 = vand.u32 2147483647, %v882
    %vm893 = vcmp.eq.f32.partialorder %v892, 8.507059e+37
    %v894 = vand.u32 %v882, 2147483648
    %v895 = vor.u32 1.1754944e-38, %v894
    %v896 = vsel %vm893, %v895, %v891
    %v897 = vmul.f32 %v872, %v896
    %v898 = vmin.f32 %v897, 1.0
    %v899 = vmax.f32 %v898, -1.0
    %v900 = vmul.f32 %v859, %v859
    %v901 = vmin.f32 16.0, %v900
    %v902 = vmul.f32 %v901, 2.1237322e-06
    %v903 = vadd.f32 %v902, 0.00028619796
    %v904 = vmul.f32 %v901, %v903
    %v905 = vadd.f32 %v904, 0.0036580483
    %v906 = vmul.f32 %v901, %v905
    %v907 = vadd.f32 %v906, 0.05243302
    %v908 = vmul.f32 %v901, %v907
    %v909 = vadd.f32 %v908, 0.18741608
    %v910 = vmul.f32 %v901, %v909
    %v911 = vadd.f32 %v910, 1.1283791
    %v912 = vmul.f32 %v859, %v911
    %v913 = vmul.f32 %v901, 3.8918573e-05
    %v914 = vadd.f32 %v913, 0.001143296
    %v915 = vmul.f32 %v901, %v914
    %v916 = vadd.f32 %v915, 0.014752088
    %v917 = vmul.f32 %v901, %v916
    %v918 = vadd.f32 %v917, 0.112945676
    %v919 = vmul.f32 %v901, %v918
    %v920 = vadd.f32 %v919, 0.4994258
    %v921 = vmul.f32 %v901, %v920
    %v922 = vadd.f32 %v921, 1.0
    %v923 = vrcp.pop %v922
    %v924 = vmul.f32 %v922, %v923
    %v925 = vsub.f32 1.0, %v924
    %v926 = vmul.f32 %v923, %v925
    %v927 = vadd.f32 %v923, %v926
    %vm928 = vweird.f32 %v922
    %vm929 = vweird.f32 %v923
    %vm930 = vmor %vm928, %vm929
    %v931 = vsel %vm930, %v923, %v927
    %v932 = vand.u32 2147483647, %v922
    %vm933 = vcmp.eq.f32.partialorder %v932, 8.507059e+37
    %v934 = vand.u32 %v922, 2147483648
    %v935 = vor.u32 1.1754944e-38, %v934
    %v936 = vsel %vm933, %v935, %v931
    %v937 = vmul.f32 %v912, %v936
    %v938 = vmin.f32 %v937, 1.0
    %v939 = vmax.f32 %v938, -1.0
    %v940 = vadd.f32 %v899, 1.0
    %v941 = vadd.f32 %v939, 1.0
    %v942 = vmul.f32 %v849, %v940
    %v943 = vmul.f32 %v850, %v941
    %v944 = vperm.slane %v128, 3
    %vm945 = vcmask 523264
    %v947 = vsel %vm945, %v942, 0
    %v950 = vsel %vm945, %v943, 0
    %952 = vmatpush.msra.mxu0 0.0
    %953 = vmatpush.msra.mxu0 0.0
    %954 = vmatpush.msra.mxu0 0.0
    %955 = vmatpush.msra.mxu0 0.0
    %956 = vmatpush.msra.mxu0 0.0
    %957 = vmatpush.msra.mxu0 0.0
    %958 = vmatpush.msra.mxu0 0.0
    %959 = vmatpush.msra.mxu0 0.0
    %960 = vmatpush.msra.mxu0 %v127
    %961 = vmatpush.msra.mxu0 %v126
    %962 = vmatpush.msra.mxu0 %v125
    %963 = vmatpush.msra.mxu0 %v124
    %964 = vmatpush.msra.mxu0 %v123
    %965 = vmatpush.msra.mxu0 %v122
    %966 = vmatpush.msra.mxu0 %v121
    %967 = vmatpush.msra.mxu0 %v120
    %968 = vmatmul.f32.gmra.mxu0 %v947
    %v969 = vpop.f32.mrf.mxu0
    %v970 = vadd.f32 %v944, %v969
    %971 = vmatmul.f32.gmra.mxu0 %v950
    %v972 = vpop.f32.mrf.mxu0
    %v973 = vadd.f32 %v944, %v972
    %974 = vdwg.mxu0
    %v975 = vadd.f32 %v970, %v815
    %v976 = vadd.f32 %v973, %v816
    %v977 = vsel %vm45, %v975, 0.0
    %978 = vadd.xlane.f32.xlu0 %v977
    %v979 = vpop.xlane.xlu0 %978
    %v980 = vsel %vm45, %v976, 0.0
    %981 = vadd.xlane.f32.xlu0 %v980
    %v982 = vpop.xlane.xlu0 %981
    %v983 = vmul.f32 %v979, %v58
    %v984 = vmul.f32 %v982, %v58
    %v985 = vsub.f32 %v975, %v983
    %v986 = vsub.f32 %v976, %v984
    %v987 = vmul.f32 %v985, %v985
    %v988 = vmul.f32 %v986, %v986
    %v989 = vsel %vm45, %v987, 0.0
    %990 = vadd.xlane.f32.xlu0 %v989
    %v991 = vpop.xlane.xlu0 %990
    %v992 = vsel %vm45, %v988, 0.0
    %993 = vadd.xlane.f32.xlu0 %v992
    %v994 = vpop.xlane.xlu0 %993
    %v995 = vmul.f32 %v991, %v58
    %v996 = vmul.f32 %v994, %v58
    %v997 = vadd.f32 %v995, 1e-12
    %v998 = vadd.f32 %v996, 1e-12
    %v999 = vrsqrt.pop %v997
    %v1000 = vmul.f32 %v999, %v997
    %v1001 = vmul.f32 %v1000, %v999
    %v1002 = vmul.f32 0.5, %v1001
    %v1003 = vsub.f32 1.5, %v1002
    %v1004 = vmul.f32 %v999, %v1003
    %vm1005 = vweird.f32 %v997
    %vm1006 = vweird.f32 %v999
    %vm1007 = vmor %vm1005, %vm1006
    %v1008 = vsel %vm1007, %v999, %v1004
    %v1009 = vrsqrt.pop %v998
    %v1010 = vmul.f32 %v1009, %v998
    %v1011 = vmul.f32 %v1010, %v1009
    %v1012 = vmul.f32 0.5, %v1011
    %v1013 = vsub.f32 1.5, %v1012
    %v1014 = vmul.f32 %v1009, %v1013
    %vm1015 = vweird.f32 %v998
    %vm1016 = vweird.f32 %v1009
    %vm1017 = vmor %vm1015, %vm1016
    %v1018 = vsel %vm1017, %v1009, %v1014
    %v1019 = vmul.f32 %v985, %v1008
    %v1020 = vmul.f32 %v986, %v1018
    %v1021 = vperm.slane %v128, 4
    %v1022 = vmul.f32 %v1019, %v1021
    %v1023 = vmul.f32 %v1020, %v1021
    %v1024 = vperm.slane %v128, 5
    %v1025 = vadd.f32 %v1022, %v1024
    %v1026 = vadd.f32 %v1023, %v1024
    %s1027 = scalar_lea.vmem %s4, 32
    %v1028 = vld [vmem:[%s1027] sm:$0xff]
    %v1029 = vld [vmem:[%s1027 + $0x8] sm:$0xff]
    %v1030 = vld [vmem:[%s1027 + $0x10] sm:$0xff]
    %v1031 = vld [vmem:[%s1027 + $0x18] sm:$0xff]
    %s1032 = scalar_lea.vmem %s5, 1
    %v1033 = vld [vmem:[%s1032] sm:$0x1]
    %s1034 = scalar_lea.vmem %s6, 32
    %v1035 = vld [vmem:[%s1034] sm:$0xff]
    %v1036 = vld [vmem:[%s1034 + $0x8] sm:$0xff]
    %v1037 = vld [vmem:[%s1034 + $0x10] sm:$0xff]
    %v1038 = vld [vmem:[%s1034 + $0x18] sm:$0xff]
    %s1039 = scalar_lea.vmem %s7, 32
    %v1040 = vld [vmem:[%s1039] sm:$0xff]
    %v1041 = vld [vmem:[%s1039 + $0x8] sm:$0xff]
    %v1042 = vld [vmem:[%s1039 + $0x10] sm:$0xff]
    %v1043 = vld [vmem:[%s1039 + $0x18] sm:$0xff]
    %s1044 = scalar_lea.vmem %s8, 64
    %v1045 = vld [vmem:[%s1044] sm:$0xff]
    %v1046 = vld [vmem:[%s1044 + $0x8] sm:$0xff]
    %v1047 = vld [vmem:[%s1044 + $0x10] sm:$0xff]
    %v1048 = vld [vmem:[%s1044 + $0x18] sm:$0xff]
    %v1049 = vld [vmem:[%s1044 + $0x20] sm:$0xff]
    %v1050 = vld [vmem:[%s1044 + $0x28] sm:$0xff]
    %v1051 = vld [vmem:[%s1044 + $0x30] sm:$0xff]
    %v1052 = vld [vmem:[%s1044 + $0x38] sm:$0xff]
    %s1053 = scalar_lea.vmem %s9, 8
    %v1054 = vld [vmem:[%s1053] sm:$0x3f]
    %s1055 = scalar_lea.vmem %s10, 1
    %v1056 = vld [vmem:[%s1055] sm:$0x1]
    %v1058 = vperm.slane %v1033, 0
    %v1061 = vsel %vm45, %v1025, 0
    %v1064 = vsel %vm45, %v1026, 0
    %1066 = vmatpush.msra.mxu0 0.0
    %1067 = vmatpush.msra.mxu0 0.0
    %1068 = vmatpush.msra.mxu0 0.0
    %1069 = vmatpush.msra.mxu0 0.0
    %1070 = vmatpush.msra.mxu0 0.0
    %1071 = vmatpush.msra.mxu0 0.0
    %1072 = vmatpush.msra.mxu0 0.0
    %1073 = vmatpush.msra.mxu0 0.0
    %1074 = vmatpush.msra.mxu0 0.0
    %1075 = vmatpush.msra.mxu0 0.0
    %1076 = vmatpush.msra.mxu0 0.0
    %1077 = vmatpush.msra.mxu0 0.0
    %1078 = vmatpush.msra.mxu0 %v1031
    %1079 = vmatpush.msra.mxu0 %v1030
    %1080 = vmatpush.msra.mxu0 %v1029
    %1081 = vmatpush.msra.mxu0 %v1028
    %1082 = vmatmul.f32.gmra.mxu0 %v1061
    %v1083 = vpop.f32.mrf.mxu0
    %v1084 = vadd.f32 %v1058, %v1083
    %1085 = vmatmul.f32.gmra.mxu0 %v1064
    %v1086 = vpop.f32.mrf.mxu0
    %v1087 = vadd.f32 %v1058, %v1086
    %1088 = vdwg.mxu0
    %1090 = vrot.lane.b32.xlu0 %v1084, 96
    %v1091 = vpop.permute.xlu0 %1090
    %v1092 = vsel %vm165, %v1084, 0
    %v1094 = vsel %vm165, %v1091, 0
    %1096 = vmatpush.xpose.msra.mxu0 0.0
    %1097 = vmatpush.xpose.msra.mxu0 0.0
    %1098 = vmatpush.xpose.msra.mxu0 0.0
    %1099 = vmatpush.xpose.msra.mxu0 0.0
    %1100 = vmatpush.xpose.msra.mxu0 0.0
    %1101 = vmatpush.xpose.msra.mxu0 0.0
    %1102 = vmatpush.xpose.msra.mxu0 0.0
    %1103 = vmatpush.xpose.msra.mxu0 0.0
    %1104 = vmatpush.xpose.msra.mxu0 0.0
    %1105 = vmatpush.xpose.msra.mxu0 0.0
    %1106 = vmatpush.xpose.msra.mxu0 0.0
    %1107 = vmatpush.xpose.msra.mxu0 0.0
    %1108 = vmatpush.xpose.msra.mxu0 0.0
    %1109 = vmatpush.xpose.msra.mxu0 0.0
    %1110 = vmatpush.xpose.msra.mxu0 0.0
    %1111 = vmatpush.xpose.msra.mxu0 %v1094
    %1112 = vmatmul.f32.gmra.mxu0 %v1092
    %v1113 = vpop.f32.mrf.mxu0
    %v1114 = vadd.f32 0.0, %v1113
    %1115 = vdwg.mxu0
    %1117 = vrot.lane.b32.xlu0 %v1087, 96
    %v1118 = vpop.permute.xlu0 %1117
    %v1119 = vsel %vm165, %v1087, 0
    %v1121 = vsel %vm165, %v1118, 0
    %1123 = vmatpush.xpose.msra.mxu0 0.0
    %1124 = vmatpush.xpose.msra.mxu0 0.0
    %1125 = vmatpush.xpose.msra.mxu0 0.0
    %1126 = vmatpush.xpose.msra.mxu0 0.0
    %1127 = vmatpush.xpose.msra.mxu0 0.0
    %1128 = vmatpush.xpose.msra.mxu0 0.0
    %1129 = vmatpush.xpose.msra.mxu0 0.0
    %1130 = vmatpush.xpose.msra.mxu0 0.0
    %1131 = vmatpush.xpose.msra.mxu0 0.0
    %1132 = vmatpush.xpose.msra.mxu0 0.0
    %1133 = vmatpush.xpose.msra.mxu0 0.0
    %1134 = vmatpush.xpose.msra.mxu0 0.0
    %1135 = vmatpush.xpose.msra.mxu0 0.0
    %1136 = vmatpush.xpose.msra.mxu0 0.0
    %1137 = vmatpush.xpose.msra.mxu0 0.0
    %1138 = vmatpush.xpose.msra.mxu0 %v1121
    %1139 = vmatmul.f32.gmra.mxu0 %v1119
    %v1140 = vpop.f32.mrf.mxu0
    %v1141 = vadd.f32 0.0, %v1140
    %1142 = vdwg.mxu0
    %v1143 = vmul.f32 %v1114, 0.35355338
    %v1144 = vmul.f32 %v1141, 0.35355338
    %v1145 = vadd.f32 %v1143, %v221
    %v1146 = vadd.f32 %v1144, %v222
    %v1147 = vsel %vm165, %v1145, -inf
    %1148 = vmax.xlane.f32.xlu0 %v1147
    %v1149 = vpop.xlane.xlu0 %1148
    %v1150 = vsel %vm165, %v1146, -inf
    %1151 = vmax.xlane.f32.xlu0 %v1150
    %v1152 = vpop.xlane.xlu0 %1151
    %v1153 = vsub.f32 %v1145, %v1149
    %v1154 = vsub.f32 %v1146, %v1152
    %v1155 = vmul.f32 %v1153, 1.442695
    %v1156 = vpow.pop %v1155
    %v1157 = vmul.f32 %v1154, 1.442695
    %v1158 = vpow.pop %v1157
    %v1159 = vsel %vm165, %v1156, 0.0
    %1160 = vadd.xlane.f32.xlu0 %v1159
    %v1161 = vpop.xlane.xlu0 %1160
    %v1162 = vsel %vm165, %v1158, 0.0
    %1163 = vadd.xlane.f32.xlu0 %v1162
    %v1164 = vpop.xlane.xlu0 %1163
    %v1165 = vrcp.pop %v1161
    %v1166 = vrcp.pop %v1164
    %v1167 = vmul.f32 %v1156, %v1165
    %v1168 = vmul.f32 %v1158, %v1166
    %1169 = vrot.lane.b32.xlu0 %v1084, 64
    %v1170 = vpop.permute.xlu0 %1169
    %v1173 = vsel %vm165, %v1167, 0
    %1175 = vmatpush.msra.mxu0 0.0
    %1176 = vmatpush.msra.mxu0 0.0
    %1177 = vmatpush.msra.mxu0 0.0
    %1178 = vmatpush.msra.mxu0 0.0
    %1179 = vmatpush.msra.mxu0 0.0
    %1180 = vmatpush.msra.mxu0 0.0
    %1181 = vmatpush.msra.mxu0 0.0
    %1182 = vmatpush.msra.mxu0 0.0
    %1183 = vmatpush.msra.mxu0 0.0
    %1184 = vmatpush.msra.mxu0 0.0
    %1185 = vmatpush.msra.mxu0 0.0
    %1186 = vmatpush.msra.mxu0 0.0
    %1187 = vmatpush.msra.mxu0 0.0
    %1188 = vmatpush.msra.mxu0 0.0
    %1189 = vmatpush.msra.mxu0 0.0
    %1190 = vmatpush.msra.mxu0 %v1170
    %1191 = vmatmul.f32.gmra.mxu0 %v1173
    %v1192 = vpop.f32.mrf.mxu0
    %v1193 = vadd.f32 0.0, %v1192
    %1194 = vdwg.mxu0
    %1195 = vrot.lane.b32.xlu0 %v1087, 64
    %v1196 = vpop.permute.xlu0 %1195
    %v1199 = vsel %vm165, %v1168, 0
    %1201 = vmatpush.msra.mxu0 0.0
    %1202 = vmatpush.msra.mxu0 0.0
    %1203 = vmatpush.msra.mxu0 0.0
    %1204 = vmatpush.msra.mxu0 0.0
    %1205 = vmatpush.msra.mxu0 0.0
    %1206 = vmatpush.msra.mxu0 0.0
    %1207 = vmatpush.msra.mxu0 0.0
    %1208 = vmatpush.msra.mxu0 0.0
    %1209 = vmatpush.msra.mxu0 0.0
    %1210 = vmatpush.msra.mxu0 0.0
    %1211 = vmatpush.msra.mxu0 0.0
    %1212 = vmatpush.msra.mxu0 0.0
    %1213 = vmatpush.msra.mxu0 0.0
    %1214 = vmatpush.msra.mxu0 0.0
    %1215 = vmatpush.msra.mxu0 0.0
    %1216 = vmatpush.msra.mxu0 %v1196
    %1217 = vmatmul.f32.gmra.mxu0 %v1199
    %v1218 = vpop.f32.mrf.mxu0
    %v1219 = vadd.f32 0.0, %v1218
    %1220 = vdwg.mxu0
    %1221 = vrot.lane.b32.xlu0 %v1084, 120
    %v1222 = vpop.permute.xlu0 %1221
    %1223 = vrot.lane.b32.xlu0 %v1084, 88
    %v1224 = vpop.permute.xlu0 %1223
    %v1225 = vsel %vm165, %v1222, 0
    %v1227 = vsel %vm165, %v1224, 0
    %1229 = vmatpush.xpose.msra.mxu0 0.0
    %1230 = vmatpush.xpose.msra.mxu0 0.0
    %1231 = vmatpush.xpose.msra.mxu0 0.0
    %1232 = vmatpush.xpose.msra.mxu0 0.0
    %1233 = vmatpush.xpose.msra.mxu0 0.0
    %1234 = vmatpush.xpose.msra.mxu0 0.0
    %1235 = vmatpush.xpose.msra.mxu0 0.0
    %1236 = vmatpush.xpose.msra.mxu0 0.0
    %1237 = vmatpush.xpose.msra.mxu0 0.0
    %1238 = vmatpush.xpose.msra.mxu0 0.0
    %1239 = vmatpush.xpose.msra.mxu0 0.0
    %1240 = vmatpush.xpose.msra.mxu0 0.0
    %1241 = vmatpush.xpose.msra.mxu0 0.0
    %1242 = vmatpush.xpose.msra.mxu0 0.0
    %1243 = vmatpush.xpose.msra.mxu0 0.0
    %1244 = vmatpush.xpose.msra.mxu0 %v1227
    %1245 = vmatmul.f32.gmra.mxu0 %v1225
    %v1246 = vpop.f32.mrf.mxu0
    %v1247 = vadd.f32 0.0, %v1246
    %1248 = vdwg.mxu0
    %1249 = vrot.lane.b32.xlu0 %v1087, 120
    %v1250 = vpop.permute.xlu0 %1249
    %1251 = vrot.lane.b32.xlu0 %v1087, 88
    %v1252 = vpop.permute.xlu0 %1251
    %v1253 = vsel %vm165, %v1250, 0
    %v1255 = vsel %vm165, %v1252, 0
    %1257 = vmatpush.xpose.msra.mxu0 0.0
    %1258 = vmatpush.xpose.msra.mxu0 0.0
    %1259 = vmatpush.xpose.msra.mxu0 0.0
    %1260 = vmatpush.xpose.msra.mxu0 0.0
    %1261 = vmatpush.xpose.msra.mxu0 0.0
    %1262 = vmatpush.xpose.msra.mxu0 0.0
    %1263 = vmatpush.xpose.msra.mxu0 0.0
    %1264 = vmatpush.xpose.msra.mxu0 0.0
    %1265 = vmatpush.xpose.msra.mxu0 0.0
    %1266 = vmatpush.xpose.msra.mxu0 0.0
    %1267 = vmatpush.xpose.msra.mxu0 0.0
    %1268 = vmatpush.xpose.msra.mxu0 0.0
    %1269 = vmatpush.xpose.msra.mxu0 0.0
    %1270 = vmatpush.xpose.msra.mxu0 0.0
    %1271 = vmatpush.xpose.msra.mxu0 0.0
    %1272 = vmatpush.xpose.msra.mxu0 %v1255
    %1273 = vmatmul.f32.gmra.mxu0 %v1253
    %v1274 = vpop.f32.mrf.mxu0
    %v1275 = vadd.f32 0.0, %v1274
    %1276 = vdwg.mxu0
    %v1277 = vmul.f32 %v1247, 0.35355338
    %v1278 = vmul.f32 %v1275, 0.35355338
    %v1279 = vadd.f32 %v1277, %v221
    %v1280 = vadd.f32 %v1278, %v222
    %v1281 = vsel %vm165, %v1279, -inf
    %1282 = vmax.xlane.f32.xlu0 %v1281
    %v1283 = vpop.xlane.xlu0 %1282
    %v1284 = vsel %vm165, %v1280, -inf
    %1285 = vmax.xlane.f32.xlu0 %v1284
    %v1286 = vpop.xlane.xlu0 %1285
    %v1287 = vsub.f32 %v1279, %v1283
    %v1288 = vsub.f32 %v1280, %v1286
    %v1289 = vmul.f32 %v1287, 1.442695
    %v1290 = vpow.pop %v1289
    %v1291 = vmul.f32 %v1288, 1.442695
    %v1292 = vpow.pop %v1291
    %v1293 = vsel %vm165, %v1290, 0.0
    %1294 = vadd.xlane.f32.xlu0 %v1293
    %v1295 = vpop.xlane.xlu0 %1294
    %v1296 = vsel %vm165, %v1292, 0.0
    %1297 = vadd.xlane.f32.xlu0 %v1296
    %v1298 = vpop.xlane.xlu0 %1297
    %v1299 = vrcp.pop %v1295
    %v1300 = vrcp.pop %v1298
    %v1301 = vmul.f32 %v1290, %v1299
    %v1302 = vmul.f32 %v1292, %v1300
    %1303 = vrot.lane.b32.xlu0 %v1084, 56
    %v1304 = vpop.permute.xlu0 %1303
    %v1307 = vsel %vm165, %v1301, 0
    %1309 = vmatpush.msra.mxu0 0.0
    %1310 = vmatpush.msra.mxu0 0.0
    %1311 = vmatpush.msra.mxu0 0.0
    %1312 = vmatpush.msra.mxu0 0.0
    %1313 = vmatpush.msra.mxu0 0.0
    %1314 = vmatpush.msra.mxu0 0.0
    %1315 = vmatpush.msra.mxu0 0.0
    %1316 = vmatpush.msra.mxu0 0.0
    %1317 = vmatpush.msra.mxu0 0.0
    %1318 = vmatpush.msra.mxu0 0.0
    %1319 = vmatpush.msra.mxu0 0.0
    %1320 = vmatpush.msra.mxu0 0.0
    %1321 = vmatpush.msra.mxu0 0.0
    %1322 = vmatpush.msra.mxu0 0.0
    %1323 = vmatpush.msra.mxu0 0.0
    %1324 = vmatpush.msra.mxu0 %v1304
    %1325 = vmatmul.f32.gmra.mxu0 %v1307
    %v1326 = vpop.f32.mrf.mxu0
    %v1327 = vadd.f32 0.0, %v1326
    %1328 = vdwg.mxu0
    %1329 = vrot.lane.b32.xlu0 %v1087, 56
    %v1330 = vpop.permute.xlu0 %1329
    %v1333 = vsel %vm165, %v1302, 0
    %1335 = vmatpush.msra.mxu0 0.0
    %1336 = vmatpush.msra.mxu0 0.0
    %1337 = vmatpush.msra.mxu0 0.0
    %1338 = vmatpush.msra.mxu0 0.0
    %1339 = vmatpush.msra.mxu0 0.0
    %1340 = vmatpush.msra.mxu0 0.0
    %1341 = vmatpush.msra.mxu0 0.0
    %1342 = vmatpush.msra.mxu0 0.0
    %1343 = vmatpush.msra.mxu0 0.0
    %1344 = vmatpush.msra.mxu0 0.0
    %1345 = vmatpush.msra.mxu0 0.0
    %1346 = vmatpush.msra.mxu0 0.0
    %1347 = vmatpush.msra.mxu0 0.0
    %1348 = vmatpush.msra.mxu0 0.0
    %1349 = vmatpush.msra.mxu0 0.0
    %1350 = vmatpush.msra.mxu0 %v1330
    %1351 = vmatmul.f32.gmra.mxu0 %v1333
    %v1352 = vpop.f32.mrf.mxu0
    %v1353 = vadd.f32 0.0, %v1352
    %1354 = vdwg.mxu0
    %1355 = vrot.lane.b32.xlu0 %v1084, 112
    %v1356 = vpop.permute.xlu0 %1355
    %1357 = vrot.lane.b32.xlu0 %v1084, 80
    %v1358 = vpop.permute.xlu0 %1357
    %v1359 = vsel %vm165, %v1356, 0
    %v1361 = vsel %vm165, %v1358, 0
    %1363 = vmatpush.xpose.msra.mxu0 0.0
    %1364 = vmatpush.xpose.msra.mxu0 0.0
    %1365 = vmatpush.xpose.msra.mxu0 0.0
    %1366 = vmatpush.xpose.msra.mxu0 0.0
    %1367 = vmatpush.xpose.msra.mxu0 0.0
    %1368 = vmatpush.xpose.msra.mxu0 0.0
    %1369 = vmatpush.xpose.msra.mxu0 0.0
    %1370 = vmatpush.xpose.msra.mxu0 0.0
    %1371 = vmatpush.xpose.msra.mxu0 0.0
    %1372 = vmatpush.xpose.msra.mxu0 0.0
    %1373 = vmatpush.xpose.msra.mxu0 0.0
    %1374 = vmatpush.xpose.msra.mxu0 0.0
    %1375 = vmatpush.xpose.msra.mxu0 0.0
    %1376 = vmatpush.xpose.msra.mxu0 0.0
    %1377 = vmatpush.xpose.msra.mxu0 0.0
    %1378 = vmatpush.xpose.msra.mxu0 %v1361
    %1379 = vmatmul.f32.gmra.mxu0 %v1359
    %v1380 = vpop.f32.mrf.mxu0
    %v1381 = vadd.f32 0.0, %v1380
    %1382 = vdwg.mxu0
    %1383 = vrot.lane.b32.xlu0 %v1087, 112
    %v1384 = vpop.permute.xlu0 %1383
    %1385 = vrot.lane.b32.xlu0 %v1087, 80
    %v1386 = vpop.permute.xlu0 %1385
    %v1387 = vsel %vm165, %v1384, 0
    %v1389 = vsel %vm165, %v1386, 0
    %1391 = vmatpush.xpose.msra.mxu0 0.0
    %1392 = vmatpush.xpose.msra.mxu0 0.0
    %1393 = vmatpush.xpose.msra.mxu0 0.0
    %1394 = vmatpush.xpose.msra.mxu0 0.0
    %1395 = vmatpush.xpose.msra.mxu0 0.0
    %1396 = vmatpush.xpose.msra.mxu0 0.0
    %1397 = vmatpush.xpose.msra.mxu0 0.0
    %1398 = vmatpush.xpose.msra.mxu0 0.0
    %1399 = vmatpush.xpose.msra.mxu0 0.0
    %1400 = vmatpush.xpose.msra.mxu0 0.0
    %1401 = vmatpush.xpose.msra.mxu0 0.0
    %1402 = vmatpush.xpose.msra.mxu0 0.0
    %1403 = vmatpush.xpose.msra.mxu0 0.0
    %1404 = vmatpush.xpose.msra.mxu0 0.0
    %1405 = vmatpush.xpose.msra.mxu0 0.0
    %1406 = vmatpush.xpose.msra.mxu0 %v1389
    %1407 = vmatmul.f32.gmra.mxu0 %v1387
    %v1408 = vpop.f32.mrf.mxu0
    %v1409 = vadd.f32 0.0, %v1408
    %1410 = vdwg.mxu0
    %v1411 = vmul.f32 %v1381, 0.35355338
    %v1412 = vmul.f32 %v1409, 0.35355338
    %v1413 = vadd.f32 %v1411, %v221
    %v1414 = vadd.f32 %v1412, %v222
    %v1415 = vsel %vm165, %v1413, -inf
    %1416 = vmax.xlane.f32.xlu0 %v1415
    %v1417 = vpop.xlane.xlu0 %1416
    %v1418 = vsel %vm165, %v1414, -inf
    %1419 = vmax.xlane.f32.xlu0 %v1418
    %v1420 = vpop.xlane.xlu0 %1419
    %v1421 = vsub.f32 %v1413, %v1417
    %v1422 = vsub.f32 %v1414, %v1420
    %v1423 = vmul.f32 %v1421, 1.442695
    %v1424 = vpow.pop %v1423
    %v1425 = vmul.f32 %v1422, 1.442695
    %v1426 = vpow.pop %v1425
    %v1427 = vsel %vm165, %v1424, 0.0
    %1428 = vadd.xlane.f32.xlu0 %v1427
    %v1429 = vpop.xlane.xlu0 %1428
    %v1430 = vsel %vm165, %v1426, 0.0
    %1431 = vadd.xlane.f32.xlu0 %v1430
    %v1432 = vpop.xlane.xlu0 %1431
    %v1433 = vrcp.pop %v1429
    %v1434 = vrcp.pop %v1432
    %v1435 = vmul.f32 %v1424, %v1433
    %v1436 = vmul.f32 %v1426, %v1434
    %1437 = vrot.lane.b32.xlu0 %v1084, 48
    %v1438 = vpop.permute.xlu0 %1437
    %v1441 = vsel %vm165, %v1435, 0
    %1443 = vmatpush.msra.mxu0 0.0
    %1444 = vmatpush.msra.mxu0 0.0
    %1445 = vmatpush.msra.mxu0 0.0
    %1446 = vmatpush.msra.mxu0 0.0
    %1447 = vmatpush.msra.mxu0 0.0
    %1448 = vmatpush.msra.mxu0 0.0
    %1449 = vmatpush.msra.mxu0 0.0
    %1450 = vmatpush.msra.mxu0 0.0
    %1451 = vmatpush.msra.mxu0 0.0
    %1452 = vmatpush.msra.mxu0 0.0
    %1453 = vmatpush.msra.mxu0 0.0
    %1454 = vmatpush.msra.mxu0 0.0
    %1455 = vmatpush.msra.mxu0 0.0
    %1456 = vmatpush.msra.mxu0 0.0
    %1457 = vmatpush.msra.mxu0 0.0
    %1458 = vmatpush.msra.mxu0 %v1438
    %1459 = vmatmul.f32.gmra.mxu0 %v1441
    %v1460 = vpop.f32.mrf.mxu0
    %v1461 = vadd.f32 0.0, %v1460
    %1462 = vdwg.mxu0
    %1463 = vrot.lane.b32.xlu0 %v1087, 48
    %v1464 = vpop.permute.xlu0 %1463
    %v1467 = vsel %vm165, %v1436, 0
    %1469 = vmatpush.msra.mxu0 0.0
    %1470 = vmatpush.msra.mxu0 0.0
    %1471 = vmatpush.msra.mxu0 0.0
    %1472 = vmatpush.msra.mxu0 0.0
    %1473 = vmatpush.msra.mxu0 0.0
    %1474 = vmatpush.msra.mxu0 0.0
    %1475 = vmatpush.msra.mxu0 0.0
    %1476 = vmatpush.msra.mxu0 0.0
    %1477 = vmatpush.msra.mxu0 0.0
    %1478 = vmatpush.msra.mxu0 0.0
    %1479 = vmatpush.msra.mxu0 0.0
    %1480 = vmatpush.msra.mxu0 0.0
    %1481 = vmatpush.msra.mxu0 0.0
    %1482 = vmatpush.msra.mxu0 0.0
    %1483 = vmatpush.msra.mxu0 0.0
    %1484 = vmatpush.msra.mxu0 %v1464
    %1485 = vmatmul.f32.gmra.mxu0 %v1467
    %v1486 = vpop.f32.mrf.mxu0
    %v1487 = vadd.f32 0.0, %v1486
    %1488 = vdwg.mxu0
    %1489 = vrot.lane.b32.xlu0 %v1084, 104
    %v1490 = vpop.permute.xlu0 %1489
    %1491 = vrot.lane.b32.xlu0 %v1084, 72
    %v1492 = vpop.permute.xlu0 %1491
    %v1493 = vsel %vm165, %v1490, 0
    %v1495 = vsel %vm165, %v1492, 0
    %1497 = vmatpush.xpose.msra.mxu0 0.0
    %1498 = vmatpush.xpose.msra.mxu0 0.0
    %1499 = vmatpush.xpose.msra.mxu0 0.0
    %1500 = vmatpush.xpose.msra.mxu0 0.0
    %1501 = vmatpush.xpose.msra.mxu0 0.0
    %1502 = vmatpush.xpose.msra.mxu0 0.0
    %1503 = vmatpush.xpose.msra.mxu0 0.0
    %1504 = vmatpush.xpose.msra.mxu0 0.0
    %1505 = vmatpush.xpose.msra.mxu0 0.0
    %1506 = vmatpush.xpose.msra.mxu0 0.0
    %1507 = vmatpush.xpose.msra.mxu0 0.0
    %1508 = vmatpush.xpose.msra.mxu0 0.0
    %1509 = vmatpush.xpose.msra.mxu0 0.0
    %1510 = vmatpush.xpose.msra.mxu0 0.0
    %1511 = vmatpush.xpose.msra.mxu0 0.0
    %1512 = vmatpush.xpose.msra.mxu0 %v1495
    %1513 = vmatmul.f32.gmra.mxu0 %v1493
    %v1514 = vpop.f32.mrf.mxu0
    %v1515 = vadd.f32 0.0, %v1514
    %1516 = vdwg.mxu0
    %1517 = vrot.lane.b32.xlu0 %v1087, 104
    %v1518 = vpop.permute.xlu0 %1517
    %1519 = vrot.lane.b32.xlu0 %v1087, 72
    %v1520 = vpop.permute.xlu0 %1519
    %v1521 = vsel %vm165, %v1518, 0
    %v1523 = vsel %vm165, %v1520, 0
    %1525 = vmatpush.xpose.msra.mxu0 0.0
    %1526 = vmatpush.xpose.msra.mxu0 0.0
    %1527 = vmatpush.xpose.msra.mxu0 0.0
    %1528 = vmatpush.xpose.msra.mxu0 0.0
    %1529 = vmatpush.xpose.msra.mxu0 0.0
    %1530 = vmatpush.xpose.msra.mxu0 0.0
    %1531 = vmatpush.xpose.msra.mxu0 0.0
    %1532 = vmatpush.xpose.msra.mxu0 0.0
    %1533 = vmatpush.xpose.msra.mxu0 0.0
    %1534 = vmatpush.xpose.msra.mxu0 0.0
    %1535 = vmatpush.xpose.msra.mxu0 0.0
    %1536 = vmatpush.xpose.msra.mxu0 0.0
    %1537 = vmatpush.xpose.msra.mxu0 0.0
    %1538 = vmatpush.xpose.msra.mxu0 0.0
    %1539 = vmatpush.xpose.msra.mxu0 0.0
    %1540 = vmatpush.xpose.msra.mxu0 %v1523
    %1541 = vmatmul.f32.gmra.mxu0 %v1521
    %v1542 = vpop.f32.mrf.mxu0
    %v1543 = vadd.f32 0.0, %v1542
    %1544 = vdwg.mxu0
    %v1545 = vmul.f32 %v1515, 0.35355338
    %v1546 = vmul.f32 %v1543, 0.35355338
    %v1547 = vadd.f32 %v1545, %v221
    %v1548 = vadd.f32 %v1546, %v222
    %v1549 = vsel %vm165, %v1547, -inf
    %1550 = vmax.xlane.f32.xlu0 %v1549
    %v1551 = vpop.xlane.xlu0 %1550
    %v1552 = vsel %vm165, %v1548, -inf
    %1553 = vmax.xlane.f32.xlu0 %v1552
    %v1554 = vpop.xlane.xlu0 %1553
    %v1555 = vsub.f32 %v1547, %v1551
    %v1556 = vsub.f32 %v1548, %v1554
    %v1557 = vmul.f32 %v1555, 1.442695
    %v1558 = vpow.pop %v1557
    %v1559 = vmul.f32 %v1556, 1.442695
    %v1560 = vpow.pop %v1559
    %v1561 = vsel %vm165, %v1558, 0.0
    %1562 = vadd.xlane.f32.xlu0 %v1561
    %v1563 = vpop.xlane.xlu0 %1562
    %v1564 = vsel %vm165, %v1560, 0.0
    %1565 = vadd.xlane.f32.xlu0 %v1564
    %v1566 = vpop.xlane.xlu0 %1565
    %v1567 = vrcp.pop %v1563
    %v1568 = vrcp.pop %v1566
    %v1569 = vmul.f32 %v1558, %v1567
    %v1570 = vmul.f32 %v1560, %v1568
    %1571 = vrot.lane.b32.xlu0 %v1084, 40
    %v1572 = vpop.permute.xlu0 %1571
    %v1575 = vsel %vm165, %v1569, 0
    %1577 = vmatpush.msra.mxu0 0.0
    %1578 = vmatpush.msra.mxu0 0.0
    %1579 = vmatpush.msra.mxu0 0.0
    %1580 = vmatpush.msra.mxu0 0.0
    %1581 = vmatpush.msra.mxu0 0.0
    %1582 = vmatpush.msra.mxu0 0.0
    %1583 = vmatpush.msra.mxu0 0.0
    %1584 = vmatpush.msra.mxu0 0.0
    %1585 = vmatpush.msra.mxu0 0.0
    %1586 = vmatpush.msra.mxu0 0.0
    %1587 = vmatpush.msra.mxu0 0.0
    %1588 = vmatpush.msra.mxu0 0.0
    %1589 = vmatpush.msra.mxu0 0.0
    %1590 = vmatpush.msra.mxu0 0.0
    %1591 = vmatpush.msra.mxu0 0.0
    %1592 = vmatpush.msra.mxu0 %v1572
    %1593 = vmatmul.f32.gmra.mxu0 %v1575
    %v1594 = vpop.f32.mrf.mxu0
    %v1595 = vadd.f32 0.0, %v1594
    %1596 = vdwg.mxu0
    %1597 = vrot.lane.b32.xlu0 %v1087, 40
    %v1598 = vpop.permute.xlu0 %1597
    %v1601 = vsel %vm165, %v1570, 0
    %1603 = vmatpush.msra.mxu0 0.0
    %1604 = vmatpush.msra.mxu0 0.0
    %1605 = vmatpush.msra.mxu0 0.0
    %1606 = vmatpush.msra.mxu0 0.0
    %1607 = vmatpush.msra.mxu0 0.0
    %1608 = vmatpush.msra.mxu0 0.0
    %1609 = vmatpush.msra.mxu0 0.0
    %1610 = vmatpush.msra.mxu0 0.0
    %1611 = vmatpush.msra.mxu0 0.0
    %1612 = vmatpush.msra.mxu0 0.0
    %1613 = vmatpush.msra.mxu0 0.0
    %1614 = vmatpush.msra.mxu0 0.0
    %1615 = vmatpush.msra.mxu0 0.0
    %1616 = vmatpush.msra.mxu0 0.0
    %1617 = vmatpush.msra.mxu0 0.0
    %1618 = vmatpush.msra.mxu0 %v1598
    %1619 = vmatmul.f32.gmra.mxu0 %v1601
    %v1620 = vpop.f32.mrf.mxu0
    %v1621 = vadd.f32 0.0, %v1620
    %1622 = vdwg.mxu0
    %1625 = vrot.lane.b32.xlu0 %v1327, 8
    %v1626 = vpop.permute.xlu0 %1625
    %1627 = vrot.lane.b32.xlu0 %v1353, 8
    %v1628 = vpop.permute.xlu0 %1627
    %1633 = vrot.lane.b32.xlu0 %v1461, 16
    %v1634 = vpop.permute.xlu0 %1633
    %1635 = vrot.lane.b32.xlu0 %v1487, 16
    %v1636 = vpop.permute.xlu0 %1635
    %1641 = vrot.lane.b32.xlu0 %v1595, 24
    %v1642 = vpop.permute.xlu0 %1641
    %1643 = vrot.lane.b32.xlu0 %v1621, 24
    %v1644 = vpop.permute.xlu0 %1643
    %v1647 = vsel %vm165, %v1193, %v1626
    %v1648 = vsel %vm165, %v1219, %v1628
    %v1649 = vsel %vm729, %v1647, %v1634
    %v1650 = vsel %vm729, %v1648, %v1636
    %v1651 = vsel %vm732, %v1649, %v1642
    %v1652 = vsel %vm732, %v1650, %v1644
    %v1653 = vperm.slane %v1054, 0
    %v1655 = vsel %vm45, %v1651, 0
    %v1658 = vsel %vm45, %v1652, 0
    %1660 = vmatpush.msra.mxu0 0.0
    %1661 = vmatpush.msra.mxu0 0.0
    %1662 = vmatpush.msra.mxu0 0.0
    %1663 = vmatpush.msra.mxu0 0.0
    %1664 = vmatpush.msra.mxu0 0.0
    %1665 = vmatpush.msra.mxu0 0.0
    %1666 = vmatpush.msra.mxu0 0.0
    %1667 = vmatpush.msra.mxu0 0.0
    %1668 = vmatpush.msra.mxu0 0.0
    %1669 = vmatpush.msra.mxu0 0.0
    %1670 = vmatpush.msra.mxu0 0.0
    %1671 = vmatpush.msra.mxu0 0.0
    %1672 = vmatpush.msra.mxu0 %v1038
    %1673 = vmatpush.msra.mxu0 %v1037
    %1674 = vmatpush.msra.mxu0 %v1036
    %1675 = vmatpush.msra.mxu0 %v1035
    %1676 = vmatmul.f32.gmra.mxu0 %v1655
    %v1677 = vpop.f32.mrf.mxu0
    %v1678 = vadd.f32 %v1653, %v1677
    %1679 = vmatmul.f32.gmra.mxu0 %v1658
    %v1680 = vpop.f32.mrf.mxu0
    %v1681 = vadd.f32 %v1653, %v1680
    %1682 = vdwg.mxu0
    %v1683 = vadd.f32 %v1678, %v1025
    %v1684 = vadd.f32 %v1681, %v1026
    %v1685 = vsel %vm45, %v1683, 0.0
    %1686 = vadd.xlane.f32.xlu0 %v1685
    %v1687 = vpop.xlane.xlu0 %1686
    %v1688 = vsel %vm45, %v1684, 0.0
    %1689 = vadd.xlane.f32.xlu0 %v1688
    %v1690 = vpop.xlane.xlu0 %1689
    %v1691 = vmul.f32 %v1687, %v58
    %v1692 = vmul.f32 %v1690, %v58
    %v1693 = vsub.f32 %v1683, %v1691
    %v1694 = vsub.f32 %v1684, %v1692
    %v1695 = vmul.f32 %v1693, %v1693
    %v1696 = vmul.f32 %v1694, %v1694
    %v1697 = vsel %vm45, %v1695, 0.0
    %1698 = vadd.xlane.f32.xlu0 %v1697
    %v1699 = vpop.xlane.xlu0 %1698
    %v1700 = vsel %vm45, %v1696, 0.0
    %1701 = vadd.xlane.f32.xlu0 %v1700
    %v1702 = vpop.xlane.xlu0 %1701
    %v1703 = vmul.f32 %v1699, %v58
    %v1704 = vmul.f32 %v1702, %v58
    %v1705 = vadd.f32 %v1703, 1e-12
    %v1706 = vadd.f32 %v1704, 1e-12
    %v1707 = vrsqrt.pop %v1705
    %v1708 = vmul.f32 %v1707, %v1705
    %v1709 = vmul.f32 %v1708, %v1707
    %v1710 = vmul.f32 0.5, %v1709
    %v1711 = vsub.f32 1.5, %v1710
    %v1712 = vmul.f32 %v1707, %v1711
    %vm1713 = vweird.f32 %v1705
    %vm1714 = vweird.f32 %v1707
    %vm1715 = vmor %vm1713, %vm1714
    %v1716 = vsel %vm1715, %v1707, %v1712
    %v1717 = vrsqrt.pop %v1706
    %v1718 = vmul.f32 %v1717, %v1706
    %v1719 = vmul.f32 %v1718, %v1717
    %v1720 = vmul.f32 0.5, %v1719
    %v1721 = vsub.f32 1.5, %v1720
    %v1722 = vmul.f32 %v1717, %v1721
    %vm1723 = vweird.f32 %v1706
    %vm1724 = vweird.f32 %v1717
    %vm1725 = vmor %vm1723, %vm1724
    %v1726 = vsel %vm1725, %v1717, %v1722
    %v1727 = vmul.f32 %v1693, %v1716
    %v1728 = vmul.f32 %v1694, %v1726
    %v1729 = vperm.slane %v1054, 1
    %v1730 = vmul.f32 %v1727, %v1729
    %v1731 = vmul.f32 %v1728, %v1729
    %v1732 = vperm.slane %v1054, 2
    %v1733 = vadd.f32 %v1730, %v1732
    %v1734 = vadd.f32 %v1731, %v1732
    %v1736 = vperm.slane %v1056, 0
    %v1739 = vsel %vm45, %v1733, 0
    %v1742 = vsel %vm45, %v1734, 0
    %1744 = vmatpush.msra.mxu0 0.0
    %1745 = vmatpush.msra.mxu0 0.0
    %1746 = vmatpush.msra.mxu0 0.0
    %1747 = vmatpush.msra.mxu0 0.0
    %1748 = vmatpush.msra.mxu0 0.0
    %1749 = vmatpush.msra.mxu0 0.0
    %1750 = vmatpush.msra.mxu0 0.0
    %1751 = vmatpush.msra.mxu0 0.0
    %1752 = vmatpush.msra.mxu0 0.0
    %1753 = vmatpush.msra.mxu0 0.0
    %1754 = vmatpush.msra.mxu0 0.0
    %1755 = vmatpush.msra.mxu0 0.0
    %1756 = vmatpush.msra.mxu0 %v1043
    %1757 = vmatpush.msra.mxu0 %v1042
    %1758 = vmatpush.msra.mxu0 %v1041
    %1759 = vmatpush.msra.mxu0 %v1040
    %1760 = vmatmul.f32.gmra.mxu0 %v1739
    %v1761 = vpop.f32.mrf.mxu0
    %v1762 = vadd.f32 %v1736, %v1761
    %1763 = vmatmul.f32.gmra.mxu0 %v1742
    %v1764 = vpop.f32.mrf.mxu0
    %v1765 = vadd.f32 %v1736, %v1764
    %1766 = vdwg.mxu0
    %v1767 = vmul.f32 %v1762, 0.5
    %v1768 = vmul.f32 %v1765, 0.5
    %v1769 = vmul.f32 %v1762, %v857
    %v1770 = vmul.f32 %v1765, %v857
    %v1771 = vmul.f32 %v1769, %v1769
    %v1772 = vmin.f32 16.0, %v1771
    %v1773 = vmul.f32 %v1772, 2.1237322e-06
    %v1774 = vadd.f32 %v1773, 0.00028619796
    %v1775 = vmul.f32 %v1772, %v1774
    %v1776 = vadd.f32 %v1775, 0.0036580483
    %v1777 = vmul.f32 %v1772, %v1776
    %v1778 = vadd.f32 %v1777, 0.05243302
    %v1779 = vmul.f32 %v1772, %v1778
    %v1780 = vadd.f32 %v1779, 0.18741608
    %v1781 = vmul.f32 %v1772, %v1780
    %v1782 = vadd.f32 %v1781, 1.1283791
    %v1783 = vmul.f32 %v1769, %v1782
    %v1784 = vmul.f32 %v1772, 3.8918573e-05
    %v1785 = vadd.f32 %v1784, 0.001143296
    %v1786 = vmul.f32 %v1772, %v1785
    %v1787 = vadd.f32 %v1786, 0.014752088
    %v1788 = vmul.f32 %v1772, %v1787
    %v1789 = vadd.f32 %v1788, 0.112945676
    %v1790 = vmul.f32 %v1772, %v1789
    %v1791 = vadd.f32 %v1790, 0.4994258
    %v1792 = vmul.f32 %v1772, %v1791
    %v1793 = vadd.f32 %v1792, 1.0
    %v1794 = vrcp.pop %v1793
    %v1795 = vmul.f32 %v1793, %v1794
    %v1796 = vsub.f32 1.0, %v1795
    %v1797 = vmul.f32 %v1794, %v1796
    %v1798 = vadd.f32 %v1794, %v1797
    %vm1799 = vweird.f32 %v1793
    %vm1800 = vweird.f32 %v1794
    %vm1801 = vmor %vm1799, %vm1800
    %v1802 = vsel %vm1801, %v1794, %v1798
    %v1803 = vand.u32 2147483647, %v1793
    %vm1804 = vcmp.eq.f32.partialorder %v1803, 8.507059e+37
    %v1805 = vand.u32 %v1793, 2147483648
    %v1806 = vor.u32 1.1754944e-38, %v1805
    %v1807 = vsel %vm1804, %v1806, %v1802
    %v1808 = vmul.f32 %v1783, %v1807
    %v1809 = vmin.f32 %v1808, 1.0
    %v1810 = vmax.f32 %v1809, -1.0
    %v1811 = vmul.f32 %v1770, %v1770
    %v1812 = vmin.f32 16.0, %v1811
    %v1813 = vmul.f32 %v1812, 2.1237322e-06
    %v1814 = vadd.f32 %v1813, 0.00028619796
    %v1815 = vmul.f32 %v1812, %v1814
    %v1816 = vadd.f32 %v1815, 0.0036580483
    %v1817 = vmul.f32 %v1812, %v1816
    %v1818 = vadd.f32 %v1817, 0.05243302
    %v1819 = vmul.f32 %v1812, %v1818
    %v1820 = vadd.f32 %v1819, 0.18741608
    %v1821 = vmul.f32 %v1812, %v1820
    %v1822 = vadd.f32 %v1821, 1.1283791
    %v1823 = vmul.f32 %v1770, %v1822
    %v1824 = vmul.f32 %v1812, 3.8918573e-05
    %v1825 = vadd.f32 %v1824, 0.001143296
    %v1826 = vmul.f32 %v1812, %v1825
    %v1827 = vadd.f32 %v1826, 0.014752088
    %v1828 = vmul.f32 %v1812, %v1827
    %v1829 = vadd.f32 %v1828, 0.112945676
    %v1830 = vmul.f32 %v1812, %v1829
    %v1831 = vadd.f32 %v1830, 0.4994258
    %v1832 = vmul.f32 %v1812, %v1831
    %v1833 = vadd.f32 %v1832, 1.0
    %v1834 = vrcp.pop %v1833
    %v1835 = vmul.f32 %v1833, %v1834
    %v1836 = vsub.f32 1.0, %v1835
    %v1837 = vmul.f32 %v1834, %v1836
    %v1838 = vadd.f32 %v1834, %v1837
    %vm1839 = vweird.f32 %v1833
    %vm1840 = vweird.f32 %v1834
    %vm1841 = vmor %vm1839, %vm1840
    %v1842 = vsel %vm1841, %v1834, %v1838
    %v1843 = vand.u32 2147483647, %v1833
    %vm1844 = vcmp.eq.f32.partialorder %v1843, 8.507059e+37
    %v1845 = vand.u32 %v1833, 2147483648
    %v1846 = vor.u32 1.1754944e-38, %v1845
    %v1847 = vsel %vm1844, %v1846, %v1842
    %v1848 = vmul.f32 %v1823, %v1847
    %v1849 = vmin.f32 %v1848, 1.0
    %v1850 = vmax.f32 %v1849, -1.0
    %v1851 = vadd.f32 %v1810, 1.0
    %v1852 = vadd.f32 %v1850, 1.0
    %v1853 = vmul.f32 %v1767, %v1851
    %v1854 = vmul.f32 %v1768, %v1852
    %v1855 = vperm.slane %v1054, 3
    %v1857 = vsel %vm945, %v1853, 0
    %v1860 = vsel %vm945, %v1854, 0
    %1862 = vmatpush.msra.mxu0 0.0
    %1863 = vmatpush.msra.mxu0 0.0
    %1864 = vmatpush.msra.mxu0 0.0
    %1865 = vmatpush.msra.mxu0 0.0
    %1866 = vmatpush.msra.mxu0 0.0
    %1867 = vmatpush.msra.mxu0 0.0
    %1868 = vmatpush.msra.mxu0 0.0
    %1869 = vmatpush.msra.mxu0 0.0
    %1870 = vmatpush.msra.mxu0 %v1052
    %1871 = vmatpush.msra.mxu0 %v1051
    %1872 = vmatpush.msra.mxu0 %v1050
    %1873 = vmatpush.msra.mxu0 %v1049
    %1874 = vmatpush.msra.mxu0 %v1048
    %1875 = vmatpush.msra.mxu0 %v1047
    %1876 = vmatpush.msra.mxu0 %v1046
    %1877 = vmatpush.msra.mxu0 %v1045
    %1878 = vmatmul.f32.gmra.mxu0 %v1857
    %v1879 = vpop.f32.mrf.mxu0
    %v1880 = vadd.f32 %v1855, %v1879
    %1881 = vmatmul.f32.gmra.mxu0 %v1860
    %v1882 = vpop.f32.mrf.mxu0
    %v1883 = vadd.f32 %v1855, %v1882
    %1884 = vdwg.mxu0
    %v1885 = vadd.f32 %v1880, %v1733
    %v1886 = vadd.f32 %v1883, %v1734
    %v1887 = vsel %vm45, %v1885, 0.0
    %1888 = vadd.xlane.f32.xlu0 %v1887
    %v1889 = vpop.xlane.xlu0 %1888
    %v1890 = vsel %vm45, %v1886, 0.0
    %1891 = vadd.xlane.f32.xlu0 %v1890
    %v1892 = vpop.xlane.xlu0 %1891
    %v1893 = vmul.f32 %v1889, %v58
    %v1894 = vmul.f32 %v1892, %v58
    %v1895 = vsub.f32 %v1885, %v1893
    %v1896 = vsub.f32 %v1886, %v1894
    %v1897 = vmul.f32 %v1895, %v1895
    %v1898 = vmul.f32 %v1896, %v1896
    %v1899 = vsel %vm45, %v1897, 0.0
    %1900 = vadd.xlane.f32.xlu0 %v1899
    %v1901 = vpop.xlane.xlu0 %1900
    %v1902 = vsel %vm45, %v1898, 0.0
    %1903 = vadd.xlane.f32.xlu0 %v1902
    %v1904 = vpop.xlane.xlu0 %1903
    %v1905 = vmul.f32 %v1901, %v58
    %v1906 = vmul.f32 %v1904, %v58
    %v1907 = vadd.f32 %v1905, 1e-12
    %v1908 = vadd.f32 %v1906, 1e-12
    %v1909 = vrsqrt.pop %v1907
    %v1910 = vmul.f32 %v1909, %v1907
    %v1911 = vmul.f32 %v1910, %v1909
    %v1912 = vmul.f32 0.5, %v1911
    %v1913 = vsub.f32 1.5, %v1912
    %v1914 = vmul.f32 %v1909, %v1913
    %vm1915 = vweird.f32 %v1907
    %vm1916 = vweird.f32 %v1909
    %vm1917 = vmor %vm1915, %vm1916
    %v1918 = vsel %vm1917, %v1909, %v1914
    %v1919 = vrsqrt.pop %v1908
    %v1920 = vmul.f32 %v1919, %v1908
    %v1921 = vmul.f32 %v1920, %v1919
    %v1922 = vmul.f32 0.5, %v1921
    %v1923 = vsub.f32 1.5, %v1922
    %v1924 = vmul.f32 %v1919, %v1923
    %vm1925 = vweird.f32 %v1908
    %vm1926 = vweird.f32 %v1919
    %vm1927 = vmor %vm1925, %vm1926
    %v1928 = vsel %vm1927, %v1919, %v1924
    %v1929 = vmul.f32 %v1895, %v1918
    %v1930 = vmul.f32 %v1896, %v1928
    %v1931 = vperm.slane %v1054, 4
    %v1932 = vmul.f32 %v1929, %v1931
    %v1933 = vmul.f32 %v1930, %v1931
    %v1934 = vperm.slane %v1054, 5
    %v1935 = vadd.f32 %v1932, %v1934
    %v1936 = vadd.f32 %v1933, %v1934
    %1937 = vst.msk [vmem:[#allocation2] sm:$0xff] %vm45, %v1935
    %1938 = vst.msk [vmem:[#allocation2 + $0x8] sm:$0xff] %vm45, %v1936
    // Predicated region
    $region46: #{bert_forward.1} parent=1 // pred_check
      _
    $region47: #{bert_forward.1} parent=1 // pred_check_branch
      %1940 = sbr.rel (0) target = $region49
    $region48: #{bert_forward.1} parent=1 // pred_region
      %1942 = vsyncadd [#allocation3], 0
      %s1943 = sshll.u32 [#allocation2], 4
      %s1944 = int_to_ptr.vmem [resolvable:$true] %s1943
      %s1945 = sshll.u32 %s11, 4
      %s1946 = int_to_ptr.hbm [resolvable:$true] %s1945
      %1951 = dma.vmem_to_hbm [thread:$0]  %s1944, 256, %s1946, [#allocation3], 128, 128, 8
    $region49: #{bert_forward.1} parent=1 // pred_fallthru
      _
    // Predicated region
    $region50: #{bert_forward.1} parent=1 // pred_check
      _
    $region51: #{bert_forward.1} parent=1 // pred_check_branch
      %1953 = sbr.rel (0) target = $region53
    $region52: #{bert_forward.1} parent=1 // pred_region
      %1955 = dma.done [#allocation3], 256
    $region53: #{bert_forward.1} parent=1 // pred_fallthru
      _
    %1956 = vsyncpa [#allocation3], 1

</llo_original>
